<compile_context>
chip_gen: v5e
topology: v5e:2x2
jax: 0.10.0
libtpu: 0.0.40
codegen_flags: <defaults>
</compile_context>

<pallas_src>
import jax
import jax.numpy as jnp
from jax import lax
from jax.experimental import pallas as pl
from jax.experimental.pallas import tpu as pltpu

# ---- hyper-parameters (match torch module defaults) -------------------------
POS_WEIGHT = 3.5
SMOOTH_FACTOR = 0.1
FOCAL_GAMMA = 2.0          # == 2 -> implemented as an explicit square
TEMPORAL_W = 0.1
SPARSITY_W = 0.01
INSTANCE_W = 0.1

VMEM_LIMIT_BYTES = 32 << 20       # safe on v5e/v6e/v7x; > default scoped on v5e
BLOCK_VMEM_BUDGET = 16 << 20      # per-block intermediate budget (2x headroom)


def _round_up(x, m):
    return ((x + m - 1) // m) * m


def _make_kernel(total_b, T, N, D, use_gram):
    inv_b = 1.0 / total_b
    inv_bt = 1.0 / (total_b * T)
    # TODO(synk): T == 1 makes the temporal term a mean over an empty tensor
    # (NaN in torch); we contribute 0 instead.
    inv_btm1 = 1.0 / (total_b * (T - 1)) if T > 1 else 0.0
    inv_bnn = 1.0 / (total_b * N * N)

    def kernel(lt_ref, attn_ref, emb_ref, out_ref):
        # ---- focal BCE-with-logits (per-block sum) ---------------------------
        lt = lt_ref[...].astype(jnp.float32)           # (Bblk, 2) packed [x | t]
        x = lt[:, 0:1]
        t = lt[:, 1:2]
        t = t * (1.0 - SMOOTH_FACTOR) + SMOOTH_FACTOR / 2.0
        # stable softplus(-x) = max(-x, 0) + log1p(exp(-|x|))
        sp_negx = jnp.maximum(-x, 0.0) + jnp.log1p(jnp.exp(-jnp.abs(x)))
        bce_plain = (1.0 - t) * x + sp_negx
        pt = jnp.exp(-bce_plain)
        bce_w = (1.0 - t) * x + (1.0 + (POS_WEIGHT - 1.0) * t) * sp_negx
        q = 1.0 - pt
        focal_sum = jnp.sum(q * q * bce_w)             # gamma == 2, no jnp.power

        # ---- attention regularizers (per-block sums) -------------------------
        a = attn_ref[...].astype(jnp.float32)          # (Bblk, T)
        sparsity_sum = jnp.sum(jnp.sum(jnp.abs(a), axis=-1, keepdims=True))
        if T > 1:
            diffs = a[:, 1:] - a[:, :-1]               # (Bblk, T-1), static slice
            temp_sum = jnp.sum(jnp.sum(diffs * diffs, axis=-1, keepdims=True))
        else:
            temp_sum = jnp.float32(0.0)

        # ---- instance consistency: pairwise distances -------------------------
        e = emb_ref[...].astype(jnp.float32)           # (Bblk, N, D)
        if use_gram:
            # MXU path: sq_i + sq_j - 2 * <e_i, e_j>; clamp + zero diagonal.
            sq = jnp.sum(e * e, axis=-1)               # (Bblk, N)
            g = jnp.einsum('bnd,bmd->bnm', e, e,
                           preferred_element_type=jnp.float32)
            d2 = sq[:, :, None] + sq[:, None, :] - 2.0 * g
            d2 = jnp.maximum(d2, 0.0)                  # rounding can go negative
            row = lax.broadcasted_iota(jnp.int32, (N, N), 0)
            col = lax.broadcasted_iota(jnp.int32, (N, N), 1)
            d2 = jnp.where((row == col)[None, :, :], 0.0, d2)  # exact-zero diag
            d = jnp.sqrt(d2)
        else:
            # VPU path (small N*D): exact, diagonal zero by construction.
            diff = e[:, :, None, :] - e[:, None, :, :]  # (Bblk, N, N, D)
            d2 = jnp.sum(diff * diff, axis=-1)          # (Bblk, N, N)
            d = jnp.sqrt(d2)
        inst_sum = jnp.sum(jnp.sum(d, axis=-1, keepdims=True))

        partial = (focal_sum * inv_b
                   + TEMPORAL_W * temp_sum * inv_btm1
                   + SPARSITY_W * sparsity_sum * inv_bt
                   + INSTANCE_W * inst_sum * inv_bnn)
        out_ref[...] = jnp.reshape(partial, (1, 1, 1))

    return kernel


def _pick_block_b(B, T, N, D, in_itemsize, use_gram,
                  budget_bytes=BLOCK_VMEM_BUDGET):
    """Largest batch block (dividing B; multiple of 8 or == B) whose per-block
    f32 intermediates -- estimated with lane padding to 128 -- fit the budget."""
    Dp = _round_up(D, 128)
    Np = _round_up(N, 128)
    Tp = _round_up(T, 128)
    if use_gram:
        # d2 / G / d : (N, Np) f32 each; e (f32) + native input tile: (N, Dp).
        per_b = 4 * (3 * N * Np + 2 * N * Dp) + 2 * in_itemsize * N * Dp
    else:
        # diff: (N, N, Dp) f32; d2/d: (N, Np); e f32 + native tile: (N, Dp).
        per_b = 4 * (2 * N * N * Dp + 2 * N * Np + 2 * N * Dp) \
            + 2 * in_itemsize * N * Dp
    per_b += 4 * Tp + 2 * in_itemsize * Tp + 4 * 256   # attention + packed x/t
    cap = max(1, budget_bytes // per_b)
    if cap >= B:
        return B                                       # single grid step
    bb = (min(cap, B) // 8) * 8
    while bb >= 8:
        if B % bb == 0:
            return bb
        bb -= 8
    return B  # no aligned divisor found: fall back to one block (vmem_limit set)


def stable_mil_loss(logits, targets, attention_weights, instance_embeddings,
                    *, block_b=None, use_gram=None):
    """Forward pass of StableMILLoss.
    logits: (B,) or (B,1); targets: (B,); attention_weights: (B,T) or (B,T,1);
    instance_embeddings: (B,N,D). Returns a scalar f32 loss."""
    x = jnp.reshape(logits, (-1,))
    B = x.shape[0]
    a = attention_weights
    if a.ndim == 3 and a.shape[-1] == 1:
        a = a[..., 0]                                   # (B, T)
    T = a.shape[1]
    N, D = instance_embeddings.shape[1], instance_embeddings.shape[2]

    if use_gram is None:
        # Gram/MXU form only pays off once the (N,N,Dpad) intermediate is big.
        use_gram = (N >= 32) or (D >= 128)

    in_itemsize = jnp.dtype(instance_embeddings.dtype).itemsize
    if block_b is None:
        block_b = _pick_block_b(B, T, N, D, in_itemsize, use_gram)
    if B % block_b != 0 or not (block_b == B or block_b % 8 == 0):
        raise ValueError(f"block_b={block_b} incompatible with B={B}")
    num_blocks = B // block_b
    grid = (num_blocks,)

    # Pack logits+targets into one tiny (B, 2) f32 operand (one DMA instead of
    # two).  Attention / embeddings keep their native dtype over HBM; the f32
    # cast happens on-chip.
    lt = jnp.concatenate(
        [jnp.reshape(x, (B, 1)).astype(jnp.float32),
         jnp.reshape(targets, (B, 1)).astype(jnp.float32)], axis=1)

    if num_blocks >= 4:
        # Long grid (block_b was VMEM-capped): deepen the pipeline instead of
        # shrinking tiles further.
        emb_spec = pl.BlockSpec((block_b, N, D), lambda i: (i, 0, 0),
                                pipeline_mode=pl.Buffered(3))
    else:
        emb_spec = pl.BlockSpec((block_b, N, D), lambda i: (i, 0, 0))

    kernel = _make_kernel(B, T, N, D, use_gram)
    partials = pl.pallas_call(
        kernel,
        out_shape=jax.ShapeDtypeStruct((num_blocks, 1, 1), jnp.float32),
        grid_spec=pltpu.PrefetchScalarGridSpec(
            num_scalar_prefetch=0,
            grid=grid,
            in_specs=[
                pl.BlockSpec((block_b, 2), lambda i: (i, 0)),
                pl.BlockSpec((block_b, T), lambda i: (i, 0)),
                emb_spec,
            ],
            out_specs=pl.BlockSpec((1, 1, 1), lambda i: (i, 0, 0)),
        ),
        compiler_params=pltpu.CompilerParams(
            dimension_semantics=("parallel",),
            vmem_limit_bytes=VMEM_LIMIT_BYTES),
    )(lt, a, instance_embeddings)
    return jnp.sum(partials)


def _reference_loss(logits, targets, attention_weights, instance_embeddings):
    """Pure-JAX reference mirroring the PyTorch module."""
    x = jnp.reshape(logits, (-1,)).astype(jnp.float32)
    t = targets.astype(jnp.float32)
    t = t * (1.0 - SMOOTH_FACTOR) + SMOOTH_FACTOR / 2.0
    sp_negx = jnp.maximum(-x, 0.0) + jnp.log1p(jnp.exp(-jnp.abs(x)))
    bce_plain = (1.0 - t) * x + sp_negx
    pt = jnp.exp(-bce_plain)
    bce_w = (1.0 - t) * x + (1.0 + (POS_WEIGHT - 1.0) * t) * sp_negx
    total = jnp.mean((1.0 - pt) ** FOCAL_GAMMA * bce_w)

    a = attention_weights
    if a.ndim == 3 and a.shape[-1] == 1:
        a = a[..., 0]
    a = a.astype(jnp.float32)
    diffs = a[:, 1:] - a[:, :-1]
    total = total + TEMPORAL_W * jnp.mean(diffs ** 2) + SPARSITY_W * jnp.mean(jnp.abs(a))

    e = instance_embeddings.astype(jnp.float32)
    diff = e[:, :, None, :] - e[:, None, :, :]
    d = jnp.sqrt(jnp.sum(diff * diff, axis=-1))
    total = total + INSTANCE_W * jnp.mean(d)
    return total


if __name__ == "__main__":
    key = jax.random.PRNGKey(0)
    k1, k2, k3, k4 = jax.random.split(key, 4)

    B, T, N, D = 16, 16, 8, 32
    logits = jax.random.normal(k1, (B, 1), dtype=jnp.float32)            # model logits
    targets = (jax.random.uniform(k2, (B,)) > 0.5).astype(jnp.float32)   # binary labels
    attention_weights = jax.nn.softmax(
        jax.random.normal(k3, (B, T, 1), dtype=jnp.float32), axis=1)
    instance_embeddings = jax.random.normal(k4, (B, N, D), dtype=jnp.float32)

    ref = _reference_loss(logits, targets, attention_weights, instance_embeddings)

    # Default config: padding-aware budget -> block_b == B, single grid step,
    # VPU cdist path at this tiny N*D.
    loss = stable_mil_loss(logits, targets, attention_weights, instance_embeddings)
    loss = jax.block_until_ready(loss)
    assert jnp.allclose(loss, ref, rtol=5e-4, atol=1e-5), (loss, ref)

    # Force the MXU Gram-matrix cdist path (what large N*D would auto-select)
    # and verify it against the same reference.
    loss_gram = stable_mil_loss(logits, targets, attention_weights,
                                instance_embeddings, use_gram=True)
    loss_gram = jax.block_until_ready(loss_gram)
    assert jnp.allclose(loss_gram, ref, rtol=2e-3, atol=1e-4), (loss_gram, ref)

    # Multi-block grid (block_b=8 -> 2 parallel batch blocks) still matches.
    loss_blk = stable_mil_loss(logits, targets, attention_weights,
                               instance_embeddings, block_b=8)
    loss_blk = jax.block_until_ready(loss_blk)
    assert jnp.allclose(loss_blk, ref, rtol=5e-4, atol=1e-5), (loss_blk, ref)

    print("KERNEL_OK")
</pallas_src>

<mosaic_0001>
module attributes {stable_mosaic.version = 11 : i64} {
  func.func @kernel(%arg0: i32, %arg1: memref<16x2xf32, #tpu.memory_space<vmem>>, %arg2: memref<16x16xf32, #tpu.memory_space<vmem>>, %arg3: memref<16x8x32xf32, #tpu.memory_space<vmem>>, %arg4: memref<1x1x1xf32, #tpu.memory_space<vmem>>) attributes {dimension_semantics = [#tpu.dimension_semantics<parallel>], iteration_bounds = array<i64: 1>, scalar_prefetch = 0 : i64, scratch_operands = 0 : i64, tpu.core_type = #tpu.core_type<tc>, window_params = [{transform_indices = @transform_0, window_bounds = array<i64: 16, 2>}, {transform_indices = @transform_1, window_bounds = array<i64: 16, 16>}, {transform_indices = @transform_2, window_bounds = array<i64: 16, 8, 32>}, {transform_indices = @transform_3, window_bounds = array<i64: 1, 1, 1>}]} {
    %c0 = arith.constant 0 : index
    %c0_0 = arith.constant 0 : index
    %0 = vector.load %arg1[%c0, %c0_0] : memref<16x2xf32, #tpu.memory_space<vmem>>, vector<16x2xf32>
    %1 = vector.extract_strided_slice %0 {offsets = [0, 0], sizes = [16, 1], strides = [1, 1]} : vector<16x2xf32> to vector<16x1xf32>
    %2 = vector.extract_strided_slice %0 {offsets = [0, 1], sizes = [16, 1], strides = [1, 1]} : vector<16x2xf32> to vector<16x1xf32>
    %cst = arith.constant 0.899999976 : f32
    %3 = vector.broadcast %cst : f32 to vector<16x1xf32>
    %4 = arith.mulf %2, %3 : vector<16x1xf32>
    %cst_1 = arith.constant 5.000000e-02 : f32
    %5 = vector.broadcast %cst_1 : f32 to vector<16x1xf32>
    %6 = arith.addf %4, %5 : vector<16x1xf32>
    %cst_2 = arith.constant 0.000000e+00 : f32
    %7 = vector.broadcast %cst_2 : f32 to vector<16x1xf32>
    %8 = arith.subf %7, %1 : vector<16x1xf32>
    %cst_3 = arith.constant 0.000000e+00 : f32
    %9 = vector.broadcast %cst_3 : f32 to vector<16x1xf32>
    %10 = arith.maximumf %8, %9 : vector<16x1xf32>
    %11 = math.absf %1 : vector<16x1xf32>
    %cst_4 = arith.constant 0.000000e+00 : f32
    %12 = vector.broadcast %cst_4 : f32 to vector<16x1xf32>
    %13 = arith.subf %12, %11 : vector<16x1xf32>
    %14 = math.exp %13 : vector<16x1xf32>
    %15 = math.log1p %14 : vector<16x1xf32>
    %16 = arith.addf %10, %15 : vector<16x1xf32>
    %cst_5 = arith.constant 1.000000e+00 : f32
    %17 = vector.broadcast %cst_5 : f32 to vector<16x1xf32>
    %18 = arith.subf %17, %6 : vector<16x1xf32>
    %19 = arith.mulf %18, %1 : vector<16x1xf32>
    %20 = arith.addf %19, %16 : vector<16x1xf32>
    %cst_6 = arith.constant 0.000000e+00 : f32
    %21 = vector.broadcast %cst_6 : f32 to vector<16x1xf32>
    %22 = arith.subf %21, %20 : vector<16x1xf32>
    %23 = math.exp %22 : vector<16x1xf32>
    %cst_7 = arith.constant 1.000000e+00 : f32
    %24 = vector.broadcast %cst_7 : f32 to vector<16x1xf32>
    %25 = arith.subf %24, %6 : vector<16x1xf32>
    %26 = arith.mulf %25, %1 : vector<16x1xf32>
    %cst_8 = arith.constant 2.500000e+00 : f32
    %27 = vector.broadcast %cst_8 : f32 to vector<16x1xf32>
    %28 = arith.mulf %27, %6 : vector<16x1xf32>
    %cst_9 = arith.constant 1.000000e+00 : f32
    %29 = vector.broadcast %cst_9 : f32 to vector<16x1xf32>
    %30 = arith.addf %29, %28 : vector<16x1xf32>
    %31 = arith.mulf %30, %16 : vector<16x1xf32>
    %32 = arith.addf %26, %31 : vector<16x1xf32>
    %cst_10 = arith.constant 1.000000e+00 : f32
    %33 = vector.broadcast %cst_10 : f32 to vector<16x1xf32>
    %34 = arith.subf %33, %23 : vector<16x1xf32>
    %35 = arith.mulf %34, %34 : vector<16x1xf32>
    %36 = arith.mulf %35, %32 : vector<16x1xf32>
    %37 = vector.shape_cast %36 : vector<16x1xf32> to vector<1x16x1xf32>
    %cst_11 = arith.constant dense<0.000000e+00> : vector<1xf32>
    %38 = vector.multi_reduction <add>, %37, %cst_11 [1, 2] : vector<1x16x1xf32> to vector<1xf32>
    %39 = vector.shape_cast %38 : vector<1xf32> to vector<1x1x1xf32>
    %40 = vector.extract %39[0, 0, 0] : f32 from vector<1x1x1xf32>
    %c0_12 = arith.constant 0 : index
    %c0_13 = arith.constant 0 : index
    %41 = vector.load %arg2[%c0_12, %c0_13] : memref<16x16xf32, #tpu.memory_space<vmem>>, vector<16x16xf32>
    %42 = math.absf %41 : vector<16x16xf32>
    %cst_14 = arith.constant dense<0.000000e+00> : vector<16xf32>
    %43 = vector.multi_reduction <add>, %42, %cst_14 [1] : vector<16x16xf32> to vector<16xf32>
    %44 = vector.shape_cast %43 : vector<16xf32> to vector<16x1xf32>
    %45 = vector.shape_cast %44 : vector<16x1xf32> to vector<1x16x1xf32>
    %cst_15 = arith.constant dense<0.000000e+00> : vector<1xf32>
    %46 = vector.multi_reduction <add>, %45, %cst_15 [1, 2] : vector<1x16x1xf32> to vector<1xf32>
    %47 = vector.shape_cast %46 : vector<1xf32> to vector<1x1x1xf32>
    %48 = vector.extract %47[0, 0, 0] : f32 from vector<1x1x1xf32>
    %49 = vector.extract_strided_slice %41 {offsets = [0, 1], sizes = [16, 15], strides = [1, 1]} : vector<16x16xf32> to vector<16x15xf32>
    %50 = vector.extract_strided_slice %41 {offsets = [0, 0], sizes = [16, 15], strides = [1, 1]} : vector<16x16xf32> to vector<16x15xf32>
    %51 = arith.subf %49, %50 : vector<16x15xf32>
    %52 = arith.mulf %51, %51 : vector<16x15xf32>
    %cst_16 = arith.constant dense<0.000000e+00> : vector<16xf32>
    %53 = vector.multi_reduction <add>, %52, %cst_16 [1] : vector<16x15xf32> to vector<16xf32>
    %54 = vector.shape_cast %53 : vector<16xf32> to vector<16x1xf32>
    %55 = vector.shape_cast %54 : vector<16x1xf32> to vector<1x16x1xf32>
    %cst_17 = arith.constant dense<0.000000e+00> : vector<1xf32>
    %56 = vector.multi_reduction <add>, %55, %cst_17 [1, 2] : vector<1x16x1xf32> to vector<1xf32>
    %57 = vector.shape_cast %56 : vector<1xf32> to vector<1x1x1xf32>
    %58 = vector.extract %57[0, 0, 0] : f32 from vector<1x1x1xf32>
    %c0_18 = arith.constant 0 : index
    %c0_19 = arith.constant 0 : index
    %c0_20 = arith.constant 0 : index
    %59 = vector.load %arg3[%c0_18, %c0_19, %c0_20] : memref<16x8x32xf32, #tpu.memory_space<vmem>>, vector<16x8x32xf32>
    %60 = vector.shape_cast %59 : vector<16x8x32xf32> to vector<16x8x1x32xf32>
    %61 = vector.shape_cast %59 : vector<16x8x32xf32> to vector<16x1x8x32xf32>
    %62 = vector.broadcast %60 : vector<16x8x1x32xf32> to vector<16x8x8x32xf32>
    %63 = vector.broadcast %61 : vector<16x1x8x32xf32> to vector<16x8x8x32xf32>
    %64 = arith.subf %62, %63 : vector<16x8x8x32xf32>
    %65 = arith.mulf %64, %64 : vector<16x8x8x32xf32>
    %cst_21 = arith.constant dense<0.000000e+00> : vector<16x8x8xf32>
    %66 = vector.multi_reduction <add>, %65, %cst_21 [3] : vector<16x8x8x32xf32> to vector<16x8x8xf32>
    %67 = math.sqrt %66 : vector<16x8x8xf32>
    %cst_22 = arith.constant dense<0.000000e+00> : vector<16x8xf32>
    %68 = vector.multi_reduction <add>, %67, %cst_22 [2] : vector<16x8x8xf32> to vector<16x8xf32>
    %69 = vector.shape_cast %68 : vector<16x8xf32> to vector<16x8x1xf32>
    %70 = vector.shape_cast %69 : vector<16x8x1xf32> to vector<1x16x8x1xf32>
    %cst_23 = arith.constant dense<0.000000e+00> : vector<1xf32>
    %71 = vector.multi_reduction <add>, %70, %cst_23 [1, 2, 3] : vector<1x16x8x1xf32> to vector<1xf32>
    %72 = vector.shape_cast %71 : vector<1xf32> to vector<1x1x1x1xf32>
    %73 = vector.extract %72[0, 0, 0, 0] : f32 from vector<1x1x1x1xf32>
    %cst_24 = arith.constant 6.250000e-02 : f32
    %74 = arith.mulf %40, %cst_24 : f32
    %cst_25 = arith.constant 1.000000e-01 : f32
    %75 = arith.mulf %cst_25, %58 : f32
    %cst_26 = arith.constant 0.00416666688 : f32
    %76 = arith.mulf %75, %cst_26 : f32
    %77 = arith.addf %74, %76 : f32
    %cst_27 = arith.constant 0.00999999977 : f32
    %78 = arith.mulf %cst_27, %48 : f32
    %cst_28 = arith.constant 3.906250e-03 : f32
    %79 = arith.mulf %78, %cst_28 : f32
    %80 = arith.addf %77, %79 : f32
    %cst_29 = arith.constant 1.000000e-01 : f32
    %81 = arith.mulf %cst_29, %73 : f32
    %cst_30 = arith.constant 9.765625E-4 : f32
    %82 = arith.mulf %81, %cst_30 : f32
    %83 = arith.addf %80, %82 : f32
    %84 = vector.broadcast %83 : f32 to vector<1x1x1xf32>
    %c0_31 = arith.constant 0 : index
    %c0_32 = arith.constant 0 : index
    %c0_33 = arith.constant 0 : index
    %85 = vector.load %arg4[%c0_31, %c0_32, %c0_33] : memref<1x1x1xf32, #tpu.memory_space<vmem>>, vector<1x1x1xf32>
    tpu.vector_store %arg4[%c0_31, %c0_32, %c0_33], %84 {strides = array<i32>} : memref<1x1x1xf32, #tpu.memory_space<vmem>>, vector<1x1x1xf32>,
    return
  }
  func.func @transform_0(%arg0: i32) -> (i32, i32) {
    %c0_i32 = arith.constant 0 : i32
    %c0_i32_0 = arith.constant 0 : i32
    return %arg0, %c0_i32 : i32, i32
  }
  func.func @transform_1(%arg0: i32) -> (i32, i32) {
    %c0_i32 = arith.constant 0 : i32
    %c0_i32_0 = arith.constant 0 : i32
    return %arg0, %c0_i32 : i32, i32
  }
  func.func @transform_2(%arg0: i32) -> (i32, i32, i32) {
    %c0_i32 = arith.constant 0 : i32
    %c0_i32_0 = arith.constant 0 : i32
    %c0_i32_1 = arith.constant 0 : i32
    return %arg0, %c0_i32, %c0_i32_0 : i32, i32, i32
  }
  func.func @transform_3(%arg0: i32) -> (i32, i32, i32) {
    %c0_i32 = arith.constant 0 : i32
    %c0_i32_0 = arith.constant 0 : i32
    %c0_i32_1 = arith.constant 0 : i32
    return %arg0, %c0_i32, %c0_i32_0 : i32, i32, i32
  }
}

</mosaic_0001>

<llo_original>
// kernel: tpu_custom_call.1
$region0: #{tpu_custom_call.1}
  #allocation0 [shape = 'u32[]', space=smem, size = 0x4, offset = 0x4, fixed_abs, tag = 'smem constant byte address 0x4 - core index']
  #allocation1 [shape = 'u32[72,128]{1,0:T(1,128)}', space=vmem, size = 0x9000, scoped, tag = 'internal scratch']
  %s0 = inlined_call_operand.vmem [shape: f32[16,2], index: 0, kind: input, shape index: {}]
  %s1 = inlined_call_operand.vmem [shape: f32[16,16], index: 1, kind: input, shape index: {}]
  %s2 = inlined_call_operand.hbm [shape: f32[16,8,32], index: 2, kind: input, shape index: {}]
  %s3 = inlined_call_operand.hbm [shape: f32[1,1,1], index: 3, kind: output, shape index: {}]
  %s4 = sld [smem:[#allocation0]]
  $region26: #{tpu_custom_call.1} parent=0
    _
  %s6 = ssub.s32 1, %s4
  %s7 = scalar_select 0, %s6, %s4
  $region1: #{tpu_custom_call.1} parent=0
    #allocation2 [shape = 'u8[65536]{0}', space=vmem, size = 0x10000, scoped, tag = 'input window, operand 2, single buffered']
    #allocation3 [shape = 's32[1]{0}', space=sflag, size = 0x4, scoped, tag = 'scoped memory for tpu_custom_call.1']
    #allocation4 [shape = 's32[1]{0}', space=sflag, size = 0x4, scoped, tag = 'scoped memory for tpu_custom_call.1']
    #allocation5 [shape = 'u8[512]{0}', space=vmem, size = 0x400, scoped, tag = 'output window, operand 0, single buffered']
    %8 = vsyncpa [#allocation3], 0
    %9 = vsyncpa [#allocation4], 0
    // Predicated region
    $region2: #{tpu_custom_call.1} parent=1 // pred_check
      _
    $region3: #{tpu_custom_call.1} parent=1 // pred_check_branch
      %11 = sbr.rel (0) target = $region5
    $region4: #{tpu_custom_call.1} parent=1 // pred_region
      _
    $region5: #{tpu_custom_call.1} parent=1 // pred_fallthru
      _
    // Predicated region
    $region6: #{tpu_custom_call.1} parent=1 // pred_check
      _
    $region7: #{tpu_custom_call.1} parent=1 // pred_check_branch
      %13 = sbr.rel (0) target = $region9
    $region8: #{tpu_custom_call.1} parent=1 // pred_region
      _
    $region9: #{tpu_custom_call.1} parent=1 // pred_fallthru
      _
    // Predicated region
    $region10: #{tpu_custom_call.1} parent=1 // pred_check
      _
    $region11: #{tpu_custom_call.1} parent=1 // pred_check_branch
      %15 = sbr.rel (0) target = $region13
    $region12: #{tpu_custom_call.1} parent=1 // pred_region
      %17 = vsyncadd [#allocation3], 0
      %s18 = sshll.u32 %s2, 4
      %s19 = int_to_ptr.hbm [resolvable:$true] %s18
      %s20 = sshll.u32 [#allocation2], 4
      %s21 = int_to_ptr.vmem [resolvable:$true] %s20
      %26 = dma.hbm_to_vmem [thread:$0]  %s19, 2048, %s21, [#allocation3], 128, 128, 8
    $region13: #{tpu_custom_call.1} parent=1 // pred_fallthru
      _
    // Predicated region
    $region14: #{tpu_custom_call.1} parent=1 // pred_check
      _
    $region15: #{tpu_custom_call.1} parent=1 // pred_check_branch
      %28 = sbr.rel (0) target = $region17
    $region16: #{tpu_custom_call.1} parent=1 // pred_region
      %30 = dma.done [#allocation3], 2048
    $region17: #{tpu_custom_call.1} parent=1 // pred_fallthru
      _
    %v31 = vld [vmem:[%s0] sm:$0xff]
    %v32 = vld [vmem:[%s0 + $0x8] sm:$0xff]
    %v33 = vmul.f32 %v31, 0.9
    %v34 = vmul.f32 %v32, 0.9
    %v35 = vadd.f32 %v33, 0.05
    %v36 = vadd.f32 %v34, 0.05
    %v37 = vsub.f32 0.0, %v31
    %v38 = vsub.f32 0.0, %v32
    %v39 = vmax.f32 %v37, 0.0
    %v40 = vmax.f32 %v38, 0.0
    %v41 = vand.u32 2147483647, %v31
    %v42 = vand.u32 2147483647, %v32
    %v43 = vsub.f32 0.0, %v41
    %v44 = vsub.f32 0.0, %v42
    %v45 = vmul.f32 %v43, 1.442695
    %v46 = vpow.pop %v45
    %v47 = vmul.f32 %v44, 1.442695
    %v48 = vpow.pop %v47
    %v49 = vadd.f32 %v46, 1.0
    %v50 = vlog2.pop %v49
    %v51 = vmul.f32 %v50, 0.6931472
    %v52 = vmul.f32 -0.5, %v46
    %v53 = vadd.f32 %v52, 1.0
    %v54 = vmul.f32 %v53, %v46
    %v55 = vand.u32 2147483647, %v46
    %vm56 = vcmp.lt.f32.partialorder %v55, 0.0004427343
    %v57 = vsel %vm56, %v54, %v51
    %v58 = vadd.f32 %v48, 1.0
    %v59 = vlog2.pop %v58
    %v60 = vmul.f32 %v59, 0.6931472
    %v61 = vmul.f32 -0.5, %v48
    %v62 = vadd.f32 %v61, 1.0
    %v63 = vmul.f32 %v62, %v48
    %v64 = vand.u32 2147483647, %v48
    %vm65 = vcmp.lt.f32.partialorder %v64, 0.0004427343
    %v66 = vsel %vm65, %v63, %v60
    %v67 = vadd.f32 %v39, %v57
    %v68 = vadd.f32 %v40, %v66
    %v69 = vsub.f32 1.0, %v35
    %v70 = vsub.f32 1.0, %v36
    %73 = vrot.lane.b32.xlu0 %v31, 1
    %v74 = vpop.permute.xlu0 %73
    %75 = vrot.lane.b32.xlu0 %v32, 1
    %v76 = vpop.permute.xlu0 %75
    %v79 = vmul.f32 %v69, %v74
    %v80 = vmul.f32 %v70, %v76
    %83 = vrot.lane.b32.xlu0 %v67, 1
    %v84 = vpop.permute.xlu0 %83
    %85 = vrot.lane.b32.xlu0 %v68, 1
    %v86 = vpop.permute.xlu0 %85
    %v89 = vadd.f32 %v79, %v84
    %v90 = vadd.f32 %v80, %v86
    %v91 = vsub.f32 0.0, %v89
    %v92 = vsub.f32 0.0, %v90
    %v93 = vmul.f32 %v91, 1.442695
    %v94 = vpow.pop %v93
    %v95 = vmul.f32 %v92, 1.442695
    %v96 = vpow.pop %v95
    %v97 = vmul.f32 %v35, 2.5
    %v98 = vmul.f32 %v36, 2.5
    %v99 = vadd.f32 %v97, 1.0
    %v100 = vadd.f32 %v98, 1.0
    %v101 = vmul.f32 %v99, %v84
    %v102 = vmul.f32 %v100, %v86
    %v103 = vadd.f32 %v79, %v101
    %v104 = vadd.f32 %v80, %v102
    %v105 = vsub.f32 1.0, %v94
    %v106 = vsub.f32 1.0, %v96
    %v107 = vmul.f32 %v105, %v105
    %v108 = vmul.f32 %v106, %v106
    %v109 = vmul.f32 %v107, %v103
    %v110 = vmul.f32 %v108, %v104
    %113 = vrot.lane.b32.xlu0 %v109, 127
    %v114 = vpop.permute.xlu0 %113
    %115 = vrot.lane.b32.xlu0 %v110, 127
    %v116 = vpop.permute.xlu0 %115
    %vm119 = vcmask 7168
    %v120 = vsel %vm119, %v114, 0.0
    %v121 = vsel %vm119, %v116, 0.0
    %v122 = vadd.f32 %v120, %v121
    %123 = vadd.xlane.f32.xlu0 %v122
    %v124 = vpop.xlane.xlu0 %123
    %v125 = vrot.slane %v124, 4
    %v126 = vadd.f32 %v124, %v125
    %v127 = vrot.slane %v126, 2
    %v128 = vadd.f32 %v126, %v127
    %v129 = vrot.slane %v128, 1
    %v130 = vadd.f32 %v128, %v129
    %s131 = vtos %v130
    %v132 = vld [vmem:[%s1] sm:$0xff]
    %v133 = vld [vmem:[%s1 + $0x8] sm:$0xff]
    %v134 = vand.u32 2147483647, %v132
    %v135 = vand.u32 2147483647, %v133
    %vm136 = vcmask 130048
    %v137 = vsel %vm136, %v134, 0.0
    %138 = vadd.xlane.f32.xlu0 %v137
    %v139 = vpop.xlane.xlu0 %138
    %v140 = vsel %vm136, %v135, 0.0
    %141 = vadd.xlane.f32.xlu0 %v140
    %v142 = vpop.xlane.xlu0 %141
    %v143 = vsel %vm119, %v139, 0.0
    %v144 = vsel %vm119, %v142, 0.0
    %v145 = vadd.f32 %v143, %v144
    %146 = vadd.xlane.f32.xlu0 %v145
    %v147 = vpop.xlane.xlu0 %146
    %v148 = vrot.slane %v147, 4
    %v149 = vadd.f32 %v147, %v148
    %v150 = vrot.slane %v149, 2
    %v151 = vadd.f32 %v149, %v150
    %v152 = vrot.slane %v151, 1
    %v153 = vadd.f32 %v151, %v152
    %s154 = vtos %v153
    %157 = vrot.lane.b32.xlu0 %v132, 1
    %v158 = vpop.permute.xlu0 %157
    %159 = vrot.lane.b32.xlu0 %v133, 1
    %v160 = vpop.permute.xlu0 %159
    %v163 = vsub.f32 %v132, %v158
    %v164 = vsub.f32 %v133, %v160
    %v165 = vmul.f32 %v163, %v163
    %v166 = vmul.f32 %v164, %v164
    %169 = vrot.lane.b32.xlu0 %v165, 127
    %v170 = vpop.permute.xlu0 %169
    %171 = vrot.lane.b32.xlu0 %v166, 127
    %v172 = vpop.permute.xlu0 %171
    %vm175 = vcmask 121856
    %v176 = vsel %vm175, %v170, 0.0
    %177 = vadd.xlane.f32.xlu0 %v176
    %v178 = vpop.xlane.xlu0 %177
    %v179 = vsel %vm175, %v172, 0.0
    %180 = vadd.xlane.f32.xlu0 %v179
    %v181 = vpop.xlane.xlu0 %180
    %v182 = vsel %vm119, %v178, 0.0
    %v183 = vsel %vm119, %v181, 0.0
    %v184 = vadd.f32 %v182, %v183
    %185 = vadd.xlane.f32.xlu0 %v184
    %v186 = vpop.xlane.xlu0 %185
    %v187 = vrot.slane %v186, 4
    %v188 = vadd.f32 %v186, %v187
    %v189 = vrot.slane %v188, 2
    %v190 = vadd.f32 %v188, %v189
    %v191 = vrot.slane %v190, 1
    %v192 = vadd.f32 %v190, %v191
    %s193 = vtos %v192
    %v194 = vld [vmem:[#allocation2] sm:$0xff]
    %v195 = vld [vmem:[#allocation2 + $0x8] sm:$0xff]
    %v196 = vld [vmem:[#allocation2 + $0x10] sm:$0xff]
    %v197 = vld [vmem:[#allocation2 + $0x18] sm:$0xff]
    %v198 = vld [vmem:[#allocation2 + $0x20] sm:$0xff]
    %v199 = vld [vmem:[#allocation2 + $0x28] sm:$0xff]
    %v200 = vld [vmem:[#allocation2 + $0x30] sm:$0xff]
    %v201 = vld [vmem:[#allocation2 + $0x38] sm:$0xff]
    %v202 = vld [vmem:[#allocation2 + $0x40] sm:$0xff]
    %v203 = vld [vmem:[#allocation2 + $0x48] sm:$0xff]
    %v204 = vld [vmem:[#allocation2 + $0x50] sm:$0xff]
    %v205 = vld [vmem:[#allocation2 + $0x58] sm:$0xff]
    %v206 = vld [vmem:[#allocation2 + $0x60] sm:$0xff]
    %v207 = vld [vmem:[#allocation2 + $0x68] sm:$0xff]
    %v208 = vld [vmem:[#allocation2 + $0x70] sm:$0xff]
    %v209 = vld [vmem:[#allocation2 + $0x78] sm:$0xff]
    %v226 = vrot.slane %v194, 1
    %v227 = vrot.slane %v194, 2
    %v228 = vrot.slane %v194, 3
    %v229 = vrot.slane %v194, 4
    %v230 = vrot.slane %v194, 5
    %v231 = vrot.slane %v194, 6
    %v232 = vrot.slane %v194, 7
    %v233 = vrot.slane %v195, 1
    %v234 = vrot.slane %v195, 2
    %v235 = vrot.slane %v195, 3
    %v236 = vrot.slane %v195, 4
    %v237 = vrot.slane %v195, 5
    %v238 = vrot.slane %v195, 6
    %v239 = vrot.slane %v195, 7
    %v240 = vrot.slane %v196, 1
    %v241 = vrot.slane %v196, 2
    %v242 = vrot.slane %v196, 3
    %v243 = vrot.slane %v196, 4
    %v244 = vrot.slane %v196, 5
    %v245 = vrot.slane %v196, 6
    %v246 = vrot.slane %v196, 7
    %v247 = vrot.slane %v197, 1
    %v248 = vrot.slane %v197, 2
    %v249 = vrot.slane %v197, 3
    %v250 = vrot.slane %v197, 4
    %v251 = vrot.slane %v197, 5
    %v252 = vrot.slane %v197, 6
    %v253 = vrot.slane %v197, 7
    %v254 = vrot.slane %v198, 1
    %v255 = vrot.slane %v198, 2
    %v256 = vrot.slane %v198, 3
    %v257 = vrot.slane %v198, 4
    %v258 = vrot.slane %v198, 5
    %v259 = vrot.slane %v198, 6
    %v260 = vrot.slane %v198, 7
    %v261 = vrot.slane %v199, 1
    %v262 = vrot.slane %v199, 2
    %v263 = vrot.slane %v199, 3
    %v264 = vrot.slane %v199, 4
    %v265 = vrot.slane %v199, 5
    %v266 = vrot.slane %v199, 6
    %v267 = vrot.slane %v199, 7
    %v268 = vrot.slane %v200, 1
    %v269 = vrot.slane %v200, 2
    %v270 = vrot.slane %v200, 3
    %v271 = vrot.slane %v200, 4
    %v272 = vrot.slane %v200, 5
    %v273 = vrot.slane %v200, 6
    %v274 = vrot.slane %v200, 7
    %v275 = vrot.slane %v201, 1
    %v276 = vrot.slane %v201, 2
    %v277 = vrot.slane %v201, 3
    %v278 = vrot.slane %v201, 4
    %v279 = vrot.slane %v201, 5
    %v280 = vrot.slane %v201, 6
    %v281 = vrot.slane %v201, 7
    %v282 = vrot.slane %v202, 1
    %v283 = vrot.slane %v202, 2
    %v284 = vrot.slane %v202, 3
    %v285 = vrot.slane %v202, 4
    %v286 = vrot.slane %v202, 5
    %v287 = vrot.slane %v202, 6
    %v288 = vrot.slane %v202, 7
    %v289 = vrot.slane %v203, 1
    %v290 = vrot.slane %v203, 2
    %v291 = vrot.slane %v203, 3
    %v292 = vrot.slane %v203, 4
    %v293 = vrot.slane %v203, 5
    %v294 = vrot.slane %v203, 6
    %v295 = vrot.slane %v203, 7
    %v296 = vrot.slane %v204, 1
    %v297 = vrot.slane %v204, 2
    %v298 = vrot.slane %v204, 3
    %v299 = vrot.slane %v204, 4
    %v300 = vrot.slane %v204, 5
    %v301 = vrot.slane %v204, 6
    %v302 = vrot.slane %v204, 7
    %v303 = vrot.slane %v205, 1
    %v304 = vrot.slane %v205, 2
    %v305 = vrot.slane %v205, 3
    %v306 = vrot.slane %v205, 4
    %v307 = vrot.slane %v205, 5
    %v308 = vrot.slane %v205, 6
    %v309 = vrot.slane %v205, 7
    %v310 = vrot.slane %v206, 1
    %v311 = vrot.slane %v206, 2
    %v312 = vrot.slane %v206, 3
    %v313 = vrot.slane %v206, 4
    %v314 = vrot.slane %v206, 5
    %v315 = vrot.slane %v206, 6
    %v316 = vrot.slane %v206, 7
    %v317 = vrot.slane %v207, 1
    %v318 = vrot.slane %v207, 2
    %v319 = vrot.slane %v207, 3
    %v320 = vrot.slane %v207, 4
    %v321 = vrot.slane %v207, 5
    %v322 = vrot.slane %v207, 6
    %v323 = vrot.slane %v207, 7
    %v324 = vrot.slane %v208, 1
    %v325 = vrot.slane %v208, 2
    %v326 = vrot.slane %v208, 3
    %v327 = vrot.slane %v208, 4
    %v328 = vrot.slane %v208, 5
    %v329 = vrot.slane %v208, 6
    %v330 = vrot.slane %v208, 7
    %v331 = vrot.slane %v209, 1
    %v332 = vrot.slane %v209, 2
    %v333 = vrot.slane %v209, 3
    %v334 = vrot.slane %v209, 4
    %v335 = vrot.slane %v209, 5
    %v336 = vrot.slane %v209, 6
    %v337 = vrot.slane %v209, 7
    %v338 = vperm.slane %v194, 0
    %v339 = vperm.slane %v226, 0
    %v340 = vperm.slane %v227, 0
    %v341 = vperm.slane %v228, 0
    %v342 = vperm.slane %v229, 0
    %v343 = vperm.slane %v230, 0
    %v344 = vperm.slane %v231, 0
    %v345 = vperm.slane %v232, 0
    %v346 = vperm.slane %v195, 0
    %v347 = vperm.slane %v233, 0
    %v348 = vperm.slane %v234, 0
    %v349 = vperm.slane %v235, 0
    %v350 = vperm.slane %v236, 0
    %v351 = vperm.slane %v237, 0
    %v352 = vperm.slane %v238, 0
    %v353 = vperm.slane %v239, 0
    %v354 = vperm.slane %v196, 0
    %v355 = vperm.slane %v240, 0
    %v356 = vperm.slane %v241, 0
    %v357 = vperm.slane %v242, 0
    %v358 = vperm.slane %v243, 0
    %v359 = vperm.slane %v244, 0
    %v360 = vperm.slane %v245, 0
    %v361 = vperm.slane %v246, 0
    %v362 = vperm.slane %v197, 0
    %v363 = vperm.slane %v247, 0
    %v364 = vperm.slane %v248, 0
    %v365 = vperm.slane %v249, 0
    %v366 = vperm.slane %v250, 0
    %v367 = vperm.slane %v251, 0
    %v368 = vperm.slane %v252, 0
    %v369 = vperm.slane %v253, 0
    %v370 = vperm.slane %v198, 0
    %v371 = vperm.slane %v254, 0
    %v372 = vperm.slane %v255, 0
    %v373 = vperm.slane %v256, 0
    %v374 = vperm.slane %v257, 0
    %v375 = vperm.slane %v258, 0
    %v376 = vperm.slane %v259, 0
    %v377 = vperm.slane %v260, 0
    %v378 = vperm.slane %v199, 0
    %v379 = vperm.slane %v261, 0
    %v380 = vperm.slane %v262, 0
    %v381 = vperm.slane %v263, 0
    %v382 = vperm.slane %v264, 0
    %v383 = vperm.slane %v265, 0
    %v384 = vperm.slane %v266, 0
    %v385 = vperm.slane %v267, 0
    %v386 = vperm.slane %v200, 0
    %v387 = vperm.slane %v268, 0
    %v388 = vperm.slane %v269, 0
    %v389 = vperm.slane %v270, 0
    %v390 = vperm.slane %v271, 0
    %v391 = vperm.slane %v272, 0
    %v392 = vperm.slane %v273, 0
    %v393 = vperm.slane %v274, 0
    %v394 = vperm.slane %v201, 0
    %v395 = vperm.slane %v275, 0
    %v396 = vperm.slane %v276, 0
    %v397 = vperm.slane %v277, 0
    %v398 = vperm.slane %v278, 0
    %v399 = vperm.slane %v279, 0
    %v400 = vperm.slane %v280, 0
    %v401 = vperm.slane %v281, 0
    %v402 = vperm.slane %v202, 0
    %v403 = vperm.slane %v282, 0
    %v404 = vperm.slane %v283, 0
    %v405 = vperm.slane %v284, 0
    %v406 = vperm.slane %v285, 0
    %v407 = vperm.slane %v286, 0
    %v408 = vperm.slane %v287, 0
    %v409 = vperm.slane %v288, 0
    %v410 = vperm.slane %v203, 0
    %v411 = vperm.slane %v289, 0
    %v412 = vperm.slane %v290, 0
    %v413 = vperm.slane %v291, 0
    %v414 = vperm.slane %v292, 0
    %v415 = vperm.slane %v293, 0
    %v416 = vperm.slane %v294, 0
    %v417 = vperm.slane %v295, 0
    %v418 = vperm.slane %v204, 0
    %v419 = vperm.slane %v296, 0
    %v420 = vperm.slane %v297, 0
    %v421 = vperm.slane %v298, 0
    %v422 = vperm.slane %v299, 0
    %v423 = vperm.slane %v300, 0
    %v424 = vperm.slane %v301, 0
    %v425 = vperm.slane %v302, 0
    %v426 = vperm.slane %v205, 0
    %v427 = vperm.slane %v303, 0
    %v428 = vperm.slane %v304, 0
    %v429 = vperm.slane %v305, 0
    %v430 = vperm.slane %v306, 0
    %v431 = vperm.slane %v307, 0
    %v432 = vperm.slane %v308, 0
    %v433 = vperm.slane %v309, 0
    %v434 = vperm.slane %v206, 0
    %v435 = vperm.slane %v310, 0
    %v436 = vperm.slane %v311, 0
    %v437 = vperm.slane %v312, 0
    %v438 = vperm.slane %v313, 0
    %v439 = vperm.slane %v314, 0
    %v440 = vperm.slane %v315, 0
    %v441 = vperm.slane %v316, 0
    %v442 = vperm.slane %v207, 0
    %v443 = vperm.slane %v317, 0
    %v444 = vperm.slane %v318, 0
    %v445 = vperm.slane %v319, 0
    %v446 = vperm.slane %v320, 0
    %v447 = vperm.slane %v321, 0
    %v448 = vperm.slane %v322, 0
    %v449 = vperm.slane %v323, 0
    %v450 = vperm.slane %v208, 0
    %v451 = vperm.slane %v324, 0
    %v452 = vperm.slane %v325, 0
    %v453 = vperm.slane %v326, 0
    %v454 = vperm.slane %v327, 0
    %v455 = vperm.slane %v328, 0
    %v456 = vperm.slane %v329, 0
    %v457 = vperm.slane %v330, 0
    %v458 = vperm.slane %v209, 0
    %v459 = vperm.slane %v331, 0
    %v460 = vperm.slane %v332, 0
    %v461 = vperm.slane %v333, 0
    %v462 = vperm.slane %v334, 0
    %v463 = vperm.slane %v335, 0
    %v464 = vperm.slane %v336, 0
    %v465 = vperm.slane %v337, 0
    %v594 = vsub.f32 %v338, %v194
    %v595 = vsub.f32 %v339, %v194
    %v596 = vsub.f32 %v340, %v194
    %v597 = vsub.f32 %v341, %v194
    %v598 = vsub.f32 %v342, %v194
    %v599 = vsub.f32 %v343, %v194
    %v600 = vsub.f32 %v344, %v194
    %v601 = vsub.f32 %v345, %v194
    %v602 = vsub.f32 %v346, %v195
    %v603 = vsub.f32 %v347, %v195
    %v604 = vsub.f32 %v348, %v195
    %v605 = vsub.f32 %v349, %v195
    %v606 = vsub.f32 %v350, %v195
    %v607 = vsub.f32 %v351, %v195
    %v608 = vsub.f32 %v352, %v195
    %v609 = vsub.f32 %v353, %v195
    %v610 = vsub.f32 %v354, %v196
    %v611 = vsub.f32 %v355, %v196
    %v612 = vsub.f32 %v356, %v196
    %v613 = vsub.f32 %v357, %v196
    %v614 = vsub.f32 %v358, %v196
    %v615 = vsub.f32 %v359, %v196
    %v616 = vsub.f32 %v360, %v196
    %v617 = vsub.f32 %v361, %v196
    %v618 = vsub.f32 %v362, %v197
    %v619 = vsub.f32 %v363, %v197
    %v620 = vsub.f32 %v364, %v197
    %v621 = vsub.f32 %v365, %v197
    %v622 = vsub.f32 %v366, %v197
    %v623 = vsub.f32 %v367, %v197
    %v624 = vsub.f32 %v368, %v197
    %v625 = vsub.f32 %v369, %v197
    %v626 = vsub.f32 %v370, %v198
    %v627 = vsub.f32 %v371, %v198
    %v628 = vsub.f32 %v372, %v198
    %v629 = vsub.f32 %v373, %v198
    %v630 = vsub.f32 %v374, %v198
    %v631 = vsub.f32 %v375, %v198
    %v632 = vsub.f32 %v376, %v198
    %v633 = vsub.f32 %v377, %v198
    %v634 = vsub.f32 %v378, %v199
    %v635 = vsub.f32 %v379, %v199
    %v636 = vsub.f32 %v380, %v199
    %v637 = vsub.f32 %v381, %v199
    %v638 = vsub.f32 %v382, %v199
    %v639 = vsub.f32 %v383, %v199
    %v640 = vsub.f32 %v384, %v199
    %v641 = vsub.f32 %v385, %v199
    %v642 = vsub.f32 %v386, %v200
    %v643 = vsub.f32 %v387, %v200
    %v644 = vsub.f32 %v388, %v200
    %v645 = vsub.f32 %v389, %v200
    %v646 = vsub.f32 %v390, %v200
    %v647 = vsub.f32 %v391, %v200
    %v648 = vsub.f32 %v392, %v200
    %v649 = vsub.f32 %v393, %v200
    %v650 = vsub.f32 %v394, %v201
    %v651 = vsub.f32 %v395, %v201
    %v652 = vsub.f32 %v396, %v201
    %v653 = vsub.f32 %v397, %v201
    %v654 = vsub.f32 %v398, %v201
    %v655 = vsub.f32 %v399, %v201
    %v656 = vsub.f32 %v400, %v201
    %v657 = vsub.f32 %v401, %v201
    %v658 = vsub.f32 %v402, %v202
    %v659 = vsub.f32 %v403, %v202
    %v660 = vsub.f32 %v404, %v202
    %v661 = vsub.f32 %v405, %v202
    %v662 = vsub.f32 %v406, %v202
    %v663 = vsub.f32 %v407, %v202
    %v664 = vsub.f32 %v408, %v202
    %v665 = vsub.f32 %v409, %v202
    %v666 = vsub.f32 %v410, %v203
    %v667 = vsub.f32 %v411, %v203
    %v668 = vsub.f32 %v412, %v203
    %v669 = vsub.f32 %v413, %v203
    %v670 = vsub.f32 %v414, %v203
    %v671 = vsub.f32 %v415, %v203
    %v672 = vsub.f32 %v416, %v203
    %v673 = vsub.f32 %v417, %v203
    %v674 = vsub.f32 %v418, %v204
    %v675 = vsub.f32 %v419, %v204
    %v676 = vsub.f32 %v420, %v204
    %v677 = vsub.f32 %v421, %v204
    %v678 = vsub.f32 %v422, %v204
    %v679 = vsub.f32 %v423, %v204
    %v680 = vsub.f32 %v424, %v204
    %v681 = vsub.f32 %v425, %v204
    %v682 = vsub.f32 %v426, %v205
    %v683 = vsub.f32 %v427, %v205
    %v684 = vsub.f32 %v428, %v205
    %v685 = vsub.f32 %v429, %v205
    %v686 = vsub.f32 %v430, %v205
    %v687 = vsub.f32 %v431, %v205
    %v688 = vsub.f32 %v432, %v205
    %v689 = vsub.f32 %v433, %v205
    %v690 = vsub.f32 %v434, %v206
    %v691 = vsub.f32 %v435, %v206
    %v692 = vsub.f32 %v436, %v206
    %v693 = vsub.f32 %v437, %v206
    %v694 = vsub.f32 %v438, %v206
    %v695 = vsub.f32 %v439, %v206
    %v696 = vsub.f32 %v440, %v206
    %v697 = vsub.f32 %v441, %v206
    %v698 = vsub.f32 %v442, %v207
    %v699 = vsub.f32 %v443, %v207
    %v700 = vsub.f32 %v444, %v207
    %v701 = vsub.f32 %v445, %v207
    %v702 = vsub.f32 %v446, %v207
    %v703 = vsub.f32 %v447, %v207
    %v704 = vsub.f32 %v448, %v207
    %v705 = vsub.f32 %v449, %v207
    %v706 = vsub.f32 %v450, %v208
    %v707 = vsub.f32 %v451, %v208
    %v708 = vsub.f32 %v452, %v208
    %v709 = vsub.f32 %v453, %v208
    %v710 = vsub.f32 %v454, %v208
    %v711 = vsub.f32 %v455, %v208
    %v712 = vsub.f32 %v456, %v208
    %v713 = vsub.f32 %v457, %v208
    %v714 = vsub.f32 %v458, %v209
    %v715 = vsub.f32 %v459, %v209
    %v716 = vsub.f32 %v460, %v209
    %v717 = vsub.f32 %v461, %v209
    %v718 = vsub.f32 %v462, %v209
    %v719 = vsub.f32 %v463, %v209
    %v720 = vsub.f32 %v464, %v209
    %v721 = vsub.f32 %v465, %v209
    %v722 = vmul.f32 %v594, %v594
    %v723 = vmul.f32 %v595, %v595
    %v724 = vmul.f32 %v596, %v596
    %v725 = vmul.f32 %v597, %v597
    %v726 = vmul.f32 %v598, %v598
    %v727 = vmul.f32 %v599, %v599
    %v728 = vmul.f32 %v600, %v600
    %v729 = vmul.f32 %v601, %v601
    %v730 = vmul.f32 %v602, %v602
    %v731 = vmul.f32 %v603, %v603
    %v732 = vmul.f32 %v604, %v604
    %v733 = vmul.f32 %v605, %v605
    %v734 = vmul.f32 %v606, %v606
    %v735 = vmul.f32 %v607, %v607
    %v736 = vmul.f32 %v608, %v608
    %v737 = vmul.f32 %v609, %v609
    %v738 = vmul.f32 %v610, %v610
    %v739 = vmul.f32 %v611, %v611
    %v740 = vmul.f32 %v612, %v612
    %v741 = vmul.f32 %v613, %v613
    %v742 = vmul.f32 %v614, %v614
    %v743 = vmul.f32 %v615, %v615
    %v744 = vmul.f32 %v616, %v616
    %v745 = vmul.f32 %v617, %v617
    %v746 = vmul.f32 %v618, %v618
    %v747 = vmul.f32 %v619, %v619
    %v748 = vmul.f32 %v620, %v620
    %v749 = vmul.f32 %v621, %v621
    %v750 = vmul.f32 %v622, %v622
    %v751 = vmul.f32 %v623, %v623
    %v752 = vmul.f32 %v624, %v624
    %v753 = vmul.f32 %v625, %v625
    %v754 = vmul.f32 %v626, %v626
    %v755 = vmul.f32 %v627, %v627
    %v756 = vmul.f32 %v628, %v628
    %v757 = vmul.f32 %v629, %v629
    %v758 = vmul.f32 %v630, %v630
    %v759 = vmul.f32 %v631, %v631
    %v760 = vmul.f32 %v632, %v632
    %v761 = vmul.f32 %v633, %v633
    %v762 = vmul.f32 %v634, %v634
    %v763 = vmul.f32 %v635, %v635
    %v764 = vmul.f32 %v636, %v636
    %v765 = vmul.f32 %v637, %v637
    %v766 = vmul.f32 %v638, %v638
    %v767 = vmul.f32 %v639, %v639
    %v768 = vmul.f32 %v640, %v640
    %v769 = vmul.f32 %v641, %v641
    %v770 = vmul.f32 %v642, %v642
    %v771 = vmul.f32 %v643, %v643
    %v772 = vmul.f32 %v644, %v644
    %v773 = vmul.f32 %v645, %v645
    %v774 = vmul.f32 %v646, %v646
    %v775 = vmul.f32 %v647, %v647
    %v776 = vmul.f32 %v648, %v648
    %v777 = vmul.f32 %v649, %v649
    %v778 = vmul.f32 %v650, %v650
    %v779 = vmul.f32 %v651, %v651
    %v780 = vmul.f32 %v652, %v652
    %v781 = vmul.f32 %v653, %v653
    %v782 = vmul.f32 %v654, %v654
    %v783 = vmul.f32 %v655, %v655
    %v784 = vmul.f32 %v656, %v656
    %v785 = vmul.f32 %v657, %v657
    %v786 = vmul.f32 %v658, %v658
    %v787 = vmul.f32 %v659, %v659
    %v788 = vmul.f32 %v660, %v660
    %v789 = vmul.f32 %v661, %v661
    %v790 = vmul.f32 %v662, %v662
    %v791 = vmul.f32 %v663, %v663
    %v792 = vmul.f32 %v664, %v664
    %v793 = vmul.f32 %v665, %v665
    %v794 = vmul.f32 %v666, %v666
    %v795 = vmul.f32 %v667, %v667
    %v796 = vmul.f32 %v668, %v668
    %v797 = vmul.f32 %v669, %v669
    %v798 = vmul.f32 %v670, %v670
    %v799 = vmul.f32 %v671, %v671
    %v800 = vmul.f32 %v672, %v672
    %v801 = vmul.f32 %v673, %v673
    %v802 = vmul.f32 %v674, %v674
    %v803 = vmul.f32 %v675, %v675
    %v804 = vmul.f32 %v676, %v676
    %v805 = vmul.f32 %v677, %v677
    %v806 = vmul.f32 %v678, %v678
    %v807 = vmul.f32 %v679, %v679
    %v808 = vmul.f32 %v680, %v680
    %v809 = vmul.f32 %v681, %v681
    %v810 = vmul.f32 %v682, %v682
    %v811 = vmul.f32 %v683, %v683
    %v812 = vmul.f32 %v684, %v684
    %v813 = vmul.f32 %v685, %v685
    %v814 = vmul.f32 %v686, %v686
    %v815 = vmul.f32 %v687, %v687
    %v816 = vmul.f32 %v688, %v688
    %v817 = vmul.f32 %v689, %v689
    %v818 = vmul.f32 %v690, %v690
    %v819 = vmul.f32 %v691, %v691
    %v820 = vmul.f32 %v692, %v692
    %v821 = vmul.f32 %v693, %v693
    %v822 = vmul.f32 %v694, %v694
    %v823 = vmul.f32 %v695, %v695
    %v824 = vmul.f32 %v696, %v696
    %v825 = vmul.f32 %v697, %v697
    %v826 = vmul.f32 %v698, %v698
    %v827 = vmul.f32 %v699, %v699
    %v828 = vmul.f32 %v700, %v700
    %v829 = vmul.f32 %v701, %v701
    %v830 = vmul.f32 %v702, %v702
    %v831 = vmul.f32 %v703, %v703
    %v832 = vmul.f32 %v704, %v704
    %v833 = vmul.f32 %v705, %v705
    %v834 = vmul.f32 %v706, %v706
    %v835 = vmul.f32 %v707, %v707
    %v836 = vmul.f32 %v708, %v708
    %v837 = vmul.f32 %v709, %v709
    %v838 = vmul.f32 %v710, %v710
    %v839 = vmul.f32 %v711, %v711
    %v840 = vmul.f32 %v712, %v712
    %v841 = vmul.f32 %v713, %v713
    %v842 = vmul.f32 %v714, %v714
    %v843 = vmul.f32 %v715, %v715
    %v844 = vmul.f32 %v716, %v716
    %v845 = vmul.f32 %v717, %v717
    %v846 = vmul.f32 %v718, %v718
    %v847 = vmul.f32 %v719, %v719
    %v848 = vmul.f32 %v720, %v720
    %v849 = vmul.f32 %v721, %v721
    %vm850 = vcmask 261120
    %v851 = vsel %vm850, %v722, 0.0
    %852 = vadd.xlane.f32.xlu0 %v851
    %v853 = vpop.xlane.xlu0 %852
    %v854 = vsel %vm850, %v723, 0.0
    %855 = vadd.xlane.f32.xlu0 %v854
    %v856 = vpop.xlane.xlu0 %855
    %v857 = vsel %vm850, %v724, 0.0
    %858 = vadd.xlane.f32.xlu0 %v857
    %v859 = vpop.xlane.xlu0 %858
    %v860 = vsel %vm850, %v725, 0.0
    %861 = vadd.xlane.f32.xlu0 %v860
    %v862 = vpop.xlane.xlu0 %861
    %v863 = vsel %vm850, %v726, 0.0
    %864 = vadd.xlane.f32.xlu0 %v863
    %v865 = vpop.xlane.xlu0 %864
    %v866 = vsel %vm850, %v727, 0.0
    %867 = vadd.xlane.f32.xlu0 %v866
    %v868 = vpop.xlane.xlu0 %867
    %v869 = vsel %vm850, %v728, 0.0
    %870 = vadd.xlane.f32.xlu0 %v869
    %v871 = vpop.xlane.xlu0 %870
    %v872 = vsel %vm850, %v729, 0.0
    %873 = vadd.xlane.f32.xlu0 %v872
    %v874 = vpop.xlane.xlu0 %873
    %v875 = vsel %vm850, %v730, 0.0
    %876 = vadd.xlane.f32.xlu0 %v875
    %v877 = vpop.xlane.xlu0 %876
    %v878 = vsel %vm850, %v731, 0.0
    %879 = vadd.xlane.f32.xlu0 %v878
    %v880 = vpop.xlane.xlu0 %879
    %v881 = vsel %vm850, %v732, 0.0
    %882 = vadd.xlane.f32.xlu0 %v881
    %v883 = vpop.xlane.xlu0 %882
    %v884 = vsel %vm850, %v733, 0.0
    %885 = vadd.xlane.f32.xlu0 %v884
    %v886 = vpop.xlane.xlu0 %885
    %v887 = vsel %vm850, %v734, 0.0
    %888 = vadd.xlane.f32.xlu0 %v887
    %v889 = vpop.xlane.xlu0 %888
    %v890 = vsel %vm850, %v735, 0.0
    %891 = vadd.xlane.f32.xlu0 %v890
    %v892 = vpop.xlane.xlu0 %891
    %v893 = vsel %vm850, %v736, 0.0
    %894 = vadd.xlane.f32.xlu0 %v893
    %v895 = vpop.xlane.xlu0 %894
    %v896 = vsel %vm850, %v737, 0.0
    %897 = vadd.xlane.f32.xlu0 %v896
    %v898 = vpop.xlane.xlu0 %897
    %v899 = vsel %vm850, %v738, 0.0
    %900 = vadd.xlane.f32.xlu0 %v899
    %v901 = vpop.xlane.xlu0 %900
    %v902 = vsel %vm850, %v739, 0.0
    %903 = vadd.xlane.f32.xlu0 %v902
    %v904 = vpop.xlane.xlu0 %903
    %v905 = vsel %vm850, %v740, 0.0
    %906 = vadd.xlane.f32.xlu0 %v905
    %v907 = vpop.xlane.xlu0 %906
    %v908 = vsel %vm850, %v741, 0.0
    %909 = vadd.xlane.f32.xlu0 %v908
    %v910 = vpop.xlane.xlu0 %909
    %v911 = vsel %vm850, %v742, 0.0
    %912 = vadd.xlane.f32.xlu0 %v911
    %v913 = vpop.xlane.xlu0 %912
    %v914 = vsel %vm850, %v743, 0.0
    %915 = vadd.xlane.f32.xlu0 %v914
    %v916 = vpop.xlane.xlu0 %915
    %v917 = vsel %vm850, %v744, 0.0
    %918 = vadd.xlane.f32.xlu0 %v917
    %v919 = vpop.xlane.xlu0 %918
    %v920 = vsel %vm850, %v745, 0.0
    %921 = vadd.xlane.f32.xlu0 %v920
    %v922 = vpop.xlane.xlu0 %921
    %v923 = vsel %vm850, %v746, 0.0
    %924 = vadd.xlane.f32.xlu0 %v923
    %v925 = vpop.xlane.xlu0 %924
    %v926 = vsel %vm850, %v747, 0.0
    %927 = vadd.xlane.f32.xlu0 %v926
    %v928 = vpop.xlane.xlu0 %927
    %v929 = vsel %vm850, %v748, 0.0
    %930 = vadd.xlane.f32.xlu0 %v929
    %v931 = vpop.xlane.xlu0 %930
    %v932 = vsel %vm850, %v749, 0.0
    %933 = vadd.xlane.f32.xlu0 %v932
    %v934 = vpop.xlane.xlu0 %933
    %v935 = vsel %vm850, %v750, 0.0
    %936 = vadd.xlane.f32.xlu0 %v935
    %v937 = vpop.xlane.xlu0 %936
    %v938 = vsel %vm850, %v751, 0.0
    %939 = vadd.xlane.f32.xlu0 %v938
    %v940 = vpop.xlane.xlu0 %939
    %v941 = vsel %vm850, %v752, 0.0
    %942 = vadd.xlane.f32.xlu0 %v941
    %v943 = vpop.xlane.xlu0 %942
    %v944 = vsel %vm850, %v753, 0.0
    %945 = vadd.xlane.f32.xlu0 %v944
    %v946 = vpop.xlane.xlu0 %945
    %v947 = vsel %vm850, %v754, 0.0
    %948 = vadd.xlane.f32.xlu0 %v947
    %v949 = vpop.xlane.xlu0 %948
    %v950 = vsel %vm850, %v755, 0.0
    %951 = vadd.xlane.f32.xlu0 %v950
    %v952 = vpop.xlane.xlu0 %951
    %v953 = vsel %vm850, %v756, 0.0
    %954 = vadd.xlane.f32.xlu0 %v953
    %v955 = vpop.xlane.xlu0 %954
    %v956 = vsel %vm850, %v757, 0.0
    %957 = vadd.xlane.f32.xlu0 %v956
    %v958 = vpop.xlane.xlu0 %957
    %v959 = vsel %vm850, %v758, 0.0
    %960 = vadd.xlane.f32.xlu0 %v959
    %v961 = vpop.xlane.xlu0 %960
    %v962 = vsel %vm850, %v759, 0.0
    %963 = vadd.xlane.f32.xlu0 %v962
    %v964 = vpop.xlane.xlu0 %963
    %v965 = vsel %vm850, %v760, 0.0
    %966 = vadd.xlane.f32.xlu0 %v965
    %v967 = vpop.xlane.xlu0 %966
    %v968 = vsel %vm850, %v761, 0.0
    %969 = vadd.xlane.f32.xlu0 %v968
    %v970 = vpop.xlane.xlu0 %969
    %v971 = vsel %vm850, %v762, 0.0
    %972 = vadd.xlane.f32.xlu0 %v971
    %v973 = vpop.xlane.xlu0 %972
    %v974 = vsel %vm850, %v763, 0.0
    %975 = vadd.xlane.f32.xlu0 %v974
    %v976 = vpop.xlane.xlu0 %975
    %v977 = vsel %vm850, %v764, 0.0
    %978 = vadd.xlane.f32.xlu0 %v977
    %v979 = vpop.xlane.xlu0 %978
    %v980 = vsel %vm850, %v765, 0.0
    %981 = vadd.xlane.f32.xlu0 %v980
    %v982 = vpop.xlane.xlu0 %981
    %v983 = vsel %vm850, %v766, 0.0
    %984 = vadd.xlane.f32.xlu0 %v983
    %v985 = vpop.xlane.xlu0 %984
    %v986 = vsel %vm850, %v767, 0.0
    %987 = vadd.xlane.f32.xlu0 %v986
    %v988 = vpop.xlane.xlu0 %987
    %v989 = vsel %vm850, %v768, 0.0
    %990 = vadd.xlane.f32.xlu0 %v989
    %v991 = vpop.xlane.xlu0 %990
    %v992 = vsel %vm850, %v769, 0.0
    %993 = vadd.xlane.f32.xlu0 %v992
    %v994 = vpop.xlane.xlu0 %993
    %v995 = vsel %vm850, %v770, 0.0
    %996 = vadd.xlane.f32.xlu0 %v995
    %v997 = vpop.xlane.xlu0 %996
    %v998 = vsel %vm850, %v771, 0.0
    %999 = vadd.xlane.f32.xlu0 %v998
    %v1000 = vpop.xlane.xlu0 %999
    %v1001 = vsel %vm850, %v772, 0.0
    %1002 = vadd.xlane.f32.xlu0 %v1001
    %v1003 = vpop.xlane.xlu0 %1002
    %v1004 = vsel %vm850, %v773, 0.0
    %1005 = vadd.xlane.f32.xlu0 %v1004
    %v1006 = vpop.xlane.xlu0 %1005
    %v1007 = vsel %vm850, %v774, 0.0
    %1008 = vadd.xlane.f32.xlu0 %v1007
    %v1009 = vpop.xlane.xlu0 %1008
    %v1010 = vsel %vm850, %v775, 0.0
    %1011 = vadd.xlane.f32.xlu0 %v1010
    %v1012 = vpop.xlane.xlu0 %1011
    %v1013 = vsel %vm850, %v776, 0.0
    %1014 = vadd.xlane.f32.xlu0 %v1013
    %v1015 = vpop.xlane.xlu0 %1014
    %v1016 = vsel %vm850, %v777, 0.0
    %1017 = vadd.xlane.f32.xlu0 %v1016
    %v1018 = vpop.xlane.xlu0 %1017
    %v1019 = vsel %vm850, %v778, 0.0
    %1020 = vadd.xlane.f32.xlu0 %v1019
    %v1021 = vpop.xlane.xlu0 %1020
    %v1022 = vsel %vm850, %v779, 0.0
    %1023 = vadd.xlane.f32.xlu0 %v1022
    %v1024 = vpop.xlane.xlu0 %1023
    %v1025 = vsel %vm850, %v780, 0.0
    %1026 = vadd.xlane.f32.xlu0 %v1025
    %v1027 = vpop.xlane.xlu0 %1026
    %v1028 = vsel %vm850, %v781, 0.0
    %1029 = vadd.xlane.f32.xlu0 %v1028
    %v1030 = vpop.xlane.xlu0 %1029
    %v1031 = vsel %vm850, %v782, 0.0
    %1032 = vadd.xlane.f32.xlu0 %v1031
    %v1033 = vpop.xlane.xlu0 %1032
    %v1034 = vsel %vm850, %v783, 0.0
    %1035 = vadd.xlane.f32.xlu0 %v1034
    %v1036 = vpop.xlane.xlu0 %1035
    %v1037 = vsel %vm850, %v784, 0.0
    %1038 = vadd.xlane.f32.xlu0 %v1037
    %v1039 = vpop.xlane.xlu0 %1038
    %v1040 = vsel %vm850, %v785, 0.0
    %1041 = vadd.xlane.f32.xlu0 %v1040
    %v1042 = vpop.xlane.xlu0 %1041
    %v1043 = vsel %vm850, %v786, 0.0
    %1044 = vadd.xlane.f32.xlu0 %v1043
    %v1045 = vpop.xlane.xlu0 %1044
    %v1046 = vsel %vm850, %v787, 0.0
    %1047 = vadd.xlane.f32.xlu0 %v1046
    %v1048 = vpop.xlane.xlu0 %1047
    %v1049 = vsel %vm850, %v788, 0.0
    %1050 = vadd.xlane.f32.xlu0 %v1049
    %v1051 = vpop.xlane.xlu0 %1050
    %v1052 = vsel %vm850, %v789, 0.0
    %1053 = vadd.xlane.f32.xlu0 %v1052
    %v1054 = vpop.xlane.xlu0 %1053
    %v1055 = vsel %vm850, %v790, 0.0
    %1056 = vadd.xlane.f32.xlu0 %v1055
    %v1057 = vpop.xlane.xlu0 %1056
    %v1058 = vsel %vm850, %v791, 0.0
    %1059 = vadd.xlane.f32.xlu0 %v1058
    %v1060 = vpop.xlane.xlu0 %1059
    %v1061 = vsel %vm850, %v792, 0.0
    %1062 = vadd.xlane.f32.xlu0 %v1061
    %v1063 = vpop.xlane.xlu0 %1062
    %v1064 = vsel %vm850, %v793, 0.0
    %1065 = vadd.xlane.f32.xlu0 %v1064
    %v1066 = vpop.xlane.xlu0 %1065
    %v1067 = vsel %vm850, %v794, 0.0
    %1068 = vadd.xlane.f32.xlu0 %v1067
    %v1069 = vpop.xlane.xlu0 %1068
    %v1070 = vsel %vm850, %v795, 0.0
    %1071 = vadd.xlane.f32.xlu0 %v1070
    %v1072 = vpop.xlane.xlu0 %1071
    %v1073 = vsel %vm850, %v796, 0.0
    %1074 = vadd.xlane.f32.xlu0 %v1073
    %v1075 = vpop.xlane.xlu0 %1074
    %v1076 = vsel %vm850, %v797, 0.0
    %1077 = vadd.xlane.f32.xlu0 %v1076
    %v1078 = vpop.xlane.xlu0 %1077
    %v1079 = vsel %vm850, %v798, 0.0
    %1080 = vadd.xlane.f32.xlu0 %v1079
    %v1081 = vpop.xlane.xlu0 %1080
    %v1082 = vsel %vm850, %v799, 0.0
    %1083 = vadd.xlane.f32.xlu0 %v1082
    %v1084 = vpop.xlane.xlu0 %1083
    %v1085 = vsel %vm850, %v800, 0.0
    %1086 = vadd.xlane.f32.xlu0 %v1085
    %v1087 = vpop.xlane.xlu0 %1086
    %v1088 = vsel %vm850, %v801, 0.0
    %1089 = vadd.xlane.f32.xlu0 %v1088
    %v1090 = vpop.xlane.xlu0 %1089
    %v1091 = vsel %vm850, %v802, 0.0
    %1092 = vadd.xlane.f32.xlu0 %v1091
    %v1093 = vpop.xlane.xlu0 %1092
    %v1094 = vsel %vm850, %v803, 0.0
    %1095 = vadd.xlane.f32.xlu0 %v1094
    %v1096 = vpop.xlane.xlu0 %1095
    %v1097 = vsel %vm850, %v804, 0.0
    %1098 = vadd.xlane.f32.xlu0 %v1097
    %v1099 = vpop.xlane.xlu0 %1098
    %v1100 = vsel %vm850, %v805, 0.0
    %1101 = vadd.xlane.f32.xlu0 %v1100
    %v1102 = vpop.xlane.xlu0 %1101
    %v1103 = vsel %vm850, %v806, 0.0
    %1104 = vadd.xlane.f32.xlu0 %v1103
    %v1105 = vpop.xlane.xlu0 %1104
    %v1106 = vsel %vm850, %v807, 0.0
    %1107 = vadd.xlane.f32.xlu0 %v1106
    %v1108 = vpop.xlane.xlu0 %1107
    %v1109 = vsel %vm850, %v808, 0.0
    %1110 = vadd.xlane.f32.xlu0 %v1109
    %v1111 = vpop.xlane.xlu0 %1110
    %v1112 = vsel %vm850, %v809, 0.0
    %1113 = vadd.xlane.f32.xlu0 %v1112
    %v1114 = vpop.xlane.xlu0 %1113
    %v1115 = vsel %vm850, %v810, 0.0
    %1116 = vadd.xlane.f32.xlu0 %v1115
    %v1117 = vpop.xlane.xlu0 %1116
    %v1118 = vsel %vm850, %v811, 0.0
    %1119 = vadd.xlane.f32.xlu0 %v1118
    %v1120 = vpop.xlane.xlu0 %1119
    %v1121 = vsel %vm850, %v812, 0.0
    %1122 = vadd.xlane.f32.xlu0 %v1121
    %v1123 = vpop.xlane.xlu0 %1122
    %v1124 = vsel %vm850, %v813, 0.0
    %1125 = vadd.xlane.f32.xlu0 %v1124
    %v1126 = vpop.xlane.xlu0 %1125
    %v1127 = vsel %vm850, %v814, 0.0
    %1128 = vadd.xlane.f32.xlu0 %v1127
    %v1129 = vpop.xlane.xlu0 %1128
    %v1130 = vsel %vm850, %v815, 0.0
    %1131 = vadd.xlane.f32.xlu0 %v1130
    %v1132 = vpop.xlane.xlu0 %1131
    %v1133 = vsel %vm850, %v816, 0.0
    %1134 = vadd.xlane.f32.xlu0 %v1133
    %v1135 = vpop.xlane.xlu0 %1134
    %v1136 = vsel %vm850, %v817, 0.0
    %1137 = vadd.xlane.f32.xlu0 %v1136
    %v1138 = vpop.xlane.xlu0 %1137
    %v1139 = vsel %vm850, %v818, 0.0
    %1140 = vadd.xlane.f32.xlu0 %v1139
    %v1141 = vpop.xlane.xlu0 %1140
    %v1142 = vsel %vm850, %v819, 0.0
    %1143 = vadd.xlane.f32.xlu0 %v1142
    %v1144 = vpop.xlane.xlu0 %1143
    %v1145 = vsel %vm850, %v820, 0.0
    %1146 = vadd.xlane.f32.xlu0 %v1145
    %v1147 = vpop.xlane.xlu0 %1146
    %v1148 = vsel %vm850, %v821, 0.0
    %1149 = vadd.xlane.f32.xlu0 %v1148
    %v1150 = vpop.xlane.xlu0 %1149
    %v1151 = vsel %vm850, %v822, 0.0
    %1152 = vadd.xlane.f32.xlu0 %v1151
    %v1153 = vpop.xlane.xlu0 %1152
    %v1154 = vsel %vm850, %v823, 0.0
    %1155 = vadd.xlane.f32.xlu0 %v1154
    %v1156 = vpop.xlane.xlu0 %1155
    %v1157 = vsel %vm850, %v824, 0.0
    %1158 = vadd.xlane.f32.xlu0 %v1157
    %v1159 = vpop.xlane.xlu0 %1158
    %v1160 = vsel %vm850, %v825, 0.0
    %1161 = vadd.xlane.f32.xlu0 %v1160
    %v1162 = vpop.xlane.xlu0 %1161
    %v1163 = vsel %vm850, %v826, 0.0
    %1164 = vadd.xlane.f32.xlu0 %v1163
    %v1165 = vpop.xlane.xlu0 %1164
    %v1166 = vsel %vm850, %v827, 0.0
    %1167 = vadd.xlane.f32.xlu0 %v1166
    %v1168 = vpop.xlane.xlu0 %1167
    %v1169 = vsel %vm850, %v828, 0.0
    %1170 = vadd.xlane.f32.xlu0 %v1169
    %v1171 = vpop.xlane.xlu0 %1170
    %v1172 = vsel %vm850, %v829, 0.0
    %1173 = vadd.xlane.f32.xlu0 %v1172
    %v1174 = vpop.xlane.xlu0 %1173
    %v1175 = vsel %vm850, %v830, 0.0
    %1176 = vadd.xlane.f32.xlu0 %v1175
    %v1177 = vpop.xlane.xlu0 %1176
    %v1178 = vsel %vm850, %v831, 0.0
    %1179 = vadd.xlane.f32.xlu0 %v1178
    %v1180 = vpop.xlane.xlu0 %1179
    %v1181 = vsel %vm850, %v832, 0.0
    %1182 = vadd.xlane.f32.xlu0 %v1181
    %v1183 = vpop.xlane.xlu0 %1182
    %v1184 = vsel %vm850, %v833, 0.0
    %1185 = vadd.xlane.f32.xlu0 %v1184
    %v1186 = vpop.xlane.xlu0 %1185
    %v1187 = vsel %vm850, %v834, 0.0
    %1188 = vadd.xlane.f32.xlu0 %v1187
    %v1189 = vpop.xlane.xlu0 %1188
    %v1190 = vsel %vm850, %v835, 0.0
    %1191 = vadd.xlane.f32.xlu0 %v1190
    %v1192 = vpop.xlane.xlu0 %1191
    %v1193 = vsel %vm850, %v836, 0.0
    %1194 = vadd.xlane.f32.xlu0 %v1193
    %v1195 = vpop.xlane.xlu0 %1194
    %v1196 = vsel %vm850, %v837, 0.0
    %1197 = vadd.xlane.f32.xlu0 %v1196
    %v1198 = vpop.xlane.xlu0 %1197
    %v1199 = vsel %vm850, %v838, 0.0
    %1200 = vadd.xlane.f32.xlu0 %v1199
    %v1201 = vpop.xlane.xlu0 %1200
    %v1202 = vsel %vm850, %v839, 0.0
    %1203 = vadd.xlane.f32.xlu0 %v1202
    %v1204 = vpop.xlane.xlu0 %1203
    %v1205 = vsel %vm850, %v840, 0.0
    %1206 = vadd.xlane.f32.xlu0 %v1205
    %v1207 = vpop.xlane.xlu0 %1206
    %v1208 = vsel %vm850, %v841, 0.0
    %1209 = vadd.xlane.f32.xlu0 %v1208
    %v1210 = vpop.xlane.xlu0 %1209
    %v1211 = vsel %vm850, %v842, 0.0
    %1212 = vadd.xlane.f32.xlu0 %v1211
    %v1213 = vpop.xlane.xlu0 %1212
    %v1214 = vsel %vm850, %v843, 0.0
    %1215 = vadd.xlane.f32.xlu0 %v1214
    %v1216 = vpop.xlane.xlu0 %1215
    %v1217 = vsel %vm850, %v844, 0.0
    %1218 = vadd.xlane.f32.xlu0 %v1217
    %v1219 = vpop.xlane.xlu0 %1218
    %v1220 = vsel %vm850, %v845, 0.0
    %1221 = vadd.xlane.f32.xlu0 %v1220
    %v1222 = vpop.xlane.xlu0 %1221
    %v1223 = vsel %vm850, %v846, 0.0
    %1224 = vadd.xlane.f32.xlu0 %v1223
    %v1225 = vpop.xlane.xlu0 %1224
    %v1226 = vsel %vm850, %v847, 0.0
    %1227 = vadd.xlane.f32.xlu0 %v1226
    %v1228 = vpop.xlane.xlu0 %1227
    %v1229 = vsel %vm850, %v848, 0.0
    %1230 = vadd.xlane.f32.xlu0 %v1229
    %v1231 = vpop.xlane.xlu0 %1230
    %v1232 = vsel %vm850, %v849, 0.0
    %1233 = vadd.xlane.f32.xlu0 %v1232
    %v1234 = vpop.xlane.xlu0 %1233
    %v1235 = vrsqrt.pop %v853
    %v1236 = vmul.f32 %v1235, %v853
    %v1237 = vmul.f32 %v1236, %v1235
    %v1238 = vmul.f32 0.5, %v1237
    %v1239 = vsub.f32 1.5, %v1238
    %v1240 = vmul.f32 %v1235, %v1239
    %v1241 = vmul.f32 %v853, %v1240
    %vm1242 = vcmp.eq.f32.partialorder %v853, inf
    %v1243 = vsel %vm1242, %v853, %v1241
    %vm1244 = vcmp.eq.f32.partialorder %v853, 0.0
    %v1245 = vand.u32 %v853, 2147483648
    %v1246 = vsel %vm1244, %v1245, %v1243
    %v1247 = vrsqrt.pop %v856
    %v1248 = vmul.f32 %v1247, %v856
    %v1249 = vmul.f32 %v1248, %v1247
    %v1250 = vmul.f32 0.5, %v1249
    %v1251 = vsub.f32 1.5, %v1250
    %v1252 = vmul.f32 %v1247, %v1251
    %v1253 = vmul.f32 %v856, %v1252
    %vm1254 = vcmp.eq.f32.partialorder %v856, inf
    %v1255 = vsel %vm1254, %v856, %v1253
    %vm1256 = vcmp.eq.f32.partialorder %v856, 0.0
    %v1257 = vand.u32 %v856, 2147483648
    %v1258 = vsel %vm1256, %v1257, %v1255
    %v1259 = vrsqrt.pop %v859
    %v1260 = vmul.f32 %v1259, %v859
    %v1261 = vmul.f32 %v1260, %v1259
    %v1262 = vmul.f32 0.5, %v1261
    %v1263 = vsub.f32 1.5, %v1262
    %v1264 = vmul.f32 %v1259, %v1263
    %v1265 = vmul.f32 %v859, %v1264
    %vm1266 = vcmp.eq.f32.partialorder %v859, inf
    %v1267 = vsel %vm1266, %v859, %v1265
    %vm1268 = vcmp.eq.f32.partialorder %v859, 0.0
    %v1269 = vand.u32 %v859, 2147483648
    %v1270 = vsel %vm1268, %v1269, %v1267
    %v1271 = vrsqrt.pop %v862
    %v1272 = vmul.f32 %v1271, %v862
    %v1273 = vmul.f32 %v1272, %v1271
    %v1274 = vmul.f32 0.5, %v1273
    %v1275 = vsub.f32 1.5, %v1274
    %v1276 = vmul.f32 %v1271, %v1275
    %v1277 = vmul.f32 %v862, %v1276
    %vm1278 = vcmp.eq.f32.partialorder %v862, inf
    %v1279 = vsel %vm1278, %v862, %v1277
    %vm1280 = vcmp.eq.f32.partialorder %v862, 0.0
    %v1281 = vand.u32 %v862, 2147483648
    %v1282 = vsel %vm1280, %v1281, %v1279
    %v1283 = vrsqrt.pop %v865
    %v1284 = vmul.f32 %v1283, %v865
    %v1285 = vmul.f32 %v1284, %v1283
    %v1286 = vmul.f32 0.5, %v1285
    %v1287 = vsub.f32 1.5, %v1286
    %v1288 = vmul.f32 %v1283, %v1287
    %v1289 = vmul.f32 %v865, %v1288
    %vm1290 = vcmp.eq.f32.partialorder %v865, inf
    %v1291 = vsel %vm1290, %v865, %v1289
    %vm1292 = vcmp.eq.f32.partialorder %v865, 0.0
    %v1293 = vand.u32 %v865, 2147483648
    %v1294 = vsel %vm1292, %v1293, %v1291
    %v1295 = vrsqrt.pop %v868
    %v1296 = vmul.f32 %v1295, %v868
    %v1297 = vmul.f32 %v1296, %v1295
    %v1298 = vmul.f32 0.5, %v1297
    %v1299 = vsub.f32 1.5, %v1298
    %v1300 = vmul.f32 %v1295, %v1299
    %v1301 = vmul.f32 %v868, %v1300
    %vm1302 = vcmp.eq.f32.partialorder %v868, inf
    %v1303 = vsel %vm1302, %v868, %v1301
    %vm1304 = vcmp.eq.f32.partialorder %v868, 0.0
    %v1305 = vand.u32 %v868, 2147483648
    %v1306 = vsel %vm1304, %v1305, %v1303
    %v1307 = vrsqrt.pop %v871
    %v1308 = vmul.f32 %v1307, %v871
    %v1309 = vmul.f32 %v1308, %v1307
    %v1310 = vmul.f32 0.5, %v1309
    %v1311 = vsub.f32 1.5, %v1310
    %v1312 = vmul.f32 %v1307, %v1311
    %v1313 = vmul.f32 %v871, %v1312
    %vm1314 = vcmp.eq.f32.partialorder %v871, inf
    %v1315 = vsel %vm1314, %v871, %v1313
    %vm1316 = vcmp.eq.f32.partialorder %v871, 0.0
    %v1317 = vand.u32 %v871, 2147483648
    %v1318 = vsel %vm1316, %v1317, %v1315
    %v1319 = vrsqrt.pop %v874
    %v1320 = vmul.f32 %v1319, %v874
    %v1321 = vmul.f32 %v1320, %v1319
    %v1322 = vmul.f32 0.5, %v1321
    %v1323 = vsub.f32 1.5, %v1322
    %v1324 = vmul.f32 %v1319, %v1323
    %v1325 = vmul.f32 %v874, %v1324
    %vm1326 = vcmp.eq.f32.partialorder %v874, inf
    %v1327 = vsel %vm1326, %v874, %v1325
    %vm1328 = vcmp.eq.f32.partialorder %v874, 0.0
    %v1329 = vand.u32 %v874, 2147483648
    %v1330 = vsel %vm1328, %v1329, %v1327
    %v1331 = vrsqrt.pop %v877
    %v1332 = vmul.f32 %v1331, %v877
    %v1333 = vmul.f32 %v1332, %v1331
    %v1334 = vmul.f32 0.5, %v1333
    %v1335 = vsub.f32 1.5, %v1334
    %v1336 = vmul.f32 %v1331, %v1335
    %v1337 = vmul.f32 %v877, %v1336
    %vm1338 = vcmp.eq.f32.partialorder %v877, inf
    %v1339 = vsel %vm1338, %v877, %v1337
    %vm1340 = vcmp.eq.f32.partialorder %v877, 0.0
    %v1341 = vand.u32 %v877, 2147483648
    %v1342 = vsel %vm1340, %v1341, %v1339
    %v1343 = vrsqrt.pop %v880
    %v1344 = vmul.f32 %v1343, %v880
    %v1345 = vmul.f32 %v1344, %v1343
    %v1346 = vmul.f32 0.5, %v1345
    %v1347 = vsub.f32 1.5, %v1346
    %v1348 = vmul.f32 %v1343, %v1347
    %v1349 = vmul.f32 %v880, %v1348
    %vm1350 = vcmp.eq.f32.partialorder %v880, inf
    %v1351 = vsel %vm1350, %v880, %v1349
    %vm1352 = vcmp.eq.f32.partialorder %v880, 0.0
    %v1353 = vand.u32 %v880, 2147483648
    %v1354 = vsel %vm1352, %v1353, %v1351
    %v1355 = vrsqrt.pop %v883
    %v1356 = vmul.f32 %v1355, %v883
    %v1357 = vmul.f32 %v1356, %v1355
    %v1358 = vmul.f32 0.5, %v1357
    %v1359 = vsub.f32 1.5, %v1358
    %v1360 = vmul.f32 %v1355, %v1359
    %v1361 = vmul.f32 %v883, %v1360
    %vm1362 = vcmp.eq.f32.partialorder %v883, inf
    %v1363 = vsel %vm1362, %v883, %v1361
    %vm1364 = vcmp.eq.f32.partialorder %v883, 0.0
    %v1365 = vand.u32 %v883, 2147483648
    %v1366 = vsel %vm1364, %v1365, %v1363
    %v1367 = vrsqrt.pop %v886
    %v1368 = vmul.f32 %v1367, %v886
    %v1369 = vmul.f32 %v1368, %v1367
    %v1370 = vmul.f32 0.5, %v1369
    %v1371 = vsub.f32 1.5, %v1370
    %v1372 = vmul.f32 %v1367, %v1371
    %v1373 = vmul.f32 %v886, %v1372
    %vm1374 = vcmp.eq.f32.partialorder %v886, inf
    %v1375 = vsel %vm1374, %v886, %v1373
    %vm1376 = vcmp.eq.f32.partialorder %v886, 0.0
    %v1377 = vand.u32 %v886, 2147483648
    %v1378 = vsel %vm1376, %v1377, %v1375
    %v1379 = vrsqrt.pop %v889
    %v1380 = vmul.f32 %v1379, %v889
    %v1381 = vmul.f32 %v1380, %v1379
    %v1382 = vmul.f32 0.5, %v1381
    %v1383 = vsub.f32 1.5, %v1382
    %v1384 = vmul.f32 %v1379, %v1383
    %v1385 = vmul.f32 %v889, %v1384
    %vm1386 = vcmp.eq.f32.partialorder %v889, inf
    %v1387 = vsel %vm1386, %v889, %v1385
    %vm1388 = vcmp.eq.f32.partialorder %v889, 0.0
    %v1389 = vand.u32 %v889, 2147483648
    %v1390 = vsel %vm1388, %v1389, %v1387
    %v1391 = vrsqrt.pop %v892
    %v1392 = vmul.f32 %v1391, %v892
    %v1393 = vmul.f32 %v1392, %v1391
    %v1394 = vmul.f32 0.5, %v1393
    %v1395 = vsub.f32 1.5, %v1394
    %v1396 = vmul.f32 %v1391, %v1395
    %v1397 = vmul.f32 %v892, %v1396
    %vm1398 = vcmp.eq.f32.partialorder %v892, inf
    %v1399 = vsel %vm1398, %v892, %v1397
    %vm1400 = vcmp.eq.f32.partialorder %v892, 0.0
    %v1401 = vand.u32 %v892, 2147483648
    %v1402 = vsel %vm1400, %v1401, %v1399
    %v1403 = vrsqrt.pop %v895
    %v1404 = vmul.f32 %v1403, %v895
    %v1405 = vmul.f32 %v1404, %v1403
    %v1406 = vmul.f32 0.5, %v1405
    %v1407 = vsub.f32 1.5, %v1406
    %v1408 = vmul.f32 %v1403, %v1407
    %v1409 = vmul.f32 %v895, %v1408
    %vm1410 = vcmp.eq.f32.partialorder %v895, inf
    %v1411 = vsel %vm1410, %v895, %v1409
    %vm1412 = vcmp.eq.f32.partialorder %v895, 0.0
    %v1413 = vand.u32 %v895, 2147483648
    %v1414 = vsel %vm1412, %v1413, %v1411
    %v1415 = vrsqrt.pop %v898
    %v1416 = vmul.f32 %v1415, %v898
    %v1417 = vmul.f32 %v1416, %v1415
    %v1418 = vmul.f32 0.5, %v1417
    %v1419 = vsub.f32 1.5, %v1418
    %v1420 = vmul.f32 %v1415, %v1419
    %v1421 = vmul.f32 %v898, %v1420
    %vm1422 = vcmp.eq.f32.partialorder %v898, inf
    %v1423 = vsel %vm1422, %v898, %v1421
    %vm1424 = vcmp.eq.f32.partialorder %v898, 0.0
    %v1425 = vand.u32 %v898, 2147483648
    %v1426 = vsel %vm1424, %v1425, %v1423
    %v1427 = vrsqrt.pop %v901
    %v1428 = vmul.f32 %v1427, %v901
    %v1429 = vmul.f32 %v1428, %v1427
    %v1430 = vmul.f32 0.5, %v1429
    %v1431 = vsub.f32 1.5, %v1430
    %v1432 = vmul.f32 %v1427, %v1431
    %v1433 = vmul.f32 %v901, %v1432
    %vm1434 = vcmp.eq.f32.partialorder %v901, inf
    %v1435 = vsel %vm1434, %v901, %v1433
    %vm1436 = vcmp.eq.f32.partialorder %v901, 0.0
    %v1437 = vand.u32 %v901, 2147483648
    %v1438 = vsel %vm1436, %v1437, %v1435
    %v1439 = vrsqrt.pop %v904
    %v1440 = vmul.f32 %v1439, %v904
    %v1441 = vmul.f32 %v1440, %v1439
    %v1442 = vmul.f32 0.5, %v1441
    %v1443 = vsub.f32 1.5, %v1442
    %v1444 = vmul.f32 %v1439, %v1443
    %v1445 = vmul.f32 %v904, %v1444
    %vm1446 = vcmp.eq.f32.partialorder %v904, inf
    %v1447 = vsel %vm1446, %v904, %v1445
    %vm1448 = vcmp.eq.f32.partialorder %v904, 0.0
    %v1449 = vand.u32 %v904, 2147483648
    %v1450 = vsel %vm1448, %v1449, %v1447
    %v1451 = vrsqrt.pop %v907
    %v1452 = vmul.f32 %v1451, %v907
    %v1453 = vmul.f32 %v1452, %v1451
    %v1454 = vmul.f32 0.5, %v1453
    %v1455 = vsub.f32 1.5, %v1454
    %v1456 = vmul.f32 %v1451, %v1455
    %v1457 = vmul.f32 %v907, %v1456
    %vm1458 = vcmp.eq.f32.partialorder %v907, inf
    %v1459 = vsel %vm1458, %v907, %v1457
    %vm1460 = vcmp.eq.f32.partialorder %v907, 0.0
    %v1461 = vand.u32 %v907, 2147483648
    %v1462 = vsel %vm1460, %v1461, %v1459
    %v1463 = vrsqrt.pop %v910
    %v1464 = vmul.f32 %v1463, %v910
    %v1465 = vmul.f32 %v1464, %v1463
    %v1466 = vmul.f32 0.5, %v1465
    %v1467 = vsub.f32 1.5, %v1466
    %v1468 = vmul.f32 %v1463, %v1467
    %v1469 = vmul.f32 %v910, %v1468
    %vm1470 = vcmp.eq.f32.partialorder %v910, inf
    %v1471 = vsel %vm1470, %v910, %v1469
    %vm1472 = vcmp.eq.f32.partialorder %v910, 0.0
    %v1473 = vand.u32 %v910, 2147483648
    %v1474 = vsel %vm1472, %v1473, %v1471
    %v1475 = vrsqrt.pop %v913
    %v1476 = vmul.f32 %v1475, %v913
    %v1477 = vmul.f32 %v1476, %v1475
    %v1478 = vmul.f32 0.5, %v1477
    %v1479 = vsub.f32 1.5, %v1478
    %v1480 = vmul.f32 %v1475, %v1479
    %v1481 = vmul.f32 %v913, %v1480
    %vm1482 = vcmp.eq.f32.partialorder %v913, inf
    %v1483 = vsel %vm1482, %v913, %v1481
    %vm1484 = vcmp.eq.f32.partialorder %v913, 0.0
    %v1485 = vand.u32 %v913, 2147483648
    %v1486 = vsel %vm1484, %v1485, %v1483
    %v1487 = vrsqrt.pop %v916
    %v1488 = vmul.f32 %v1487, %v916
    %v1489 = vmul.f32 %v1488, %v1487
    %v1490 = vmul.f32 0.5, %v1489
    %v1491 = vsub.f32 1.5, %v1490
    %v1492 = vmul.f32 %v1487, %v1491
    %v1493 = vmul.f32 %v916, %v1492
    %vm1494 = vcmp.eq.f32.partialorder %v916, inf
    %v1495 = vsel %vm1494, %v916, %v1493
    %vm1496 = vcmp.eq.f32.partialorder %v916, 0.0
    %v1497 = vand.u32 %v916, 2147483648
    %v1498 = vsel %vm1496, %v1497, %v1495
    %v1499 = vrsqrt.pop %v919
    %v1500 = vmul.f32 %v1499, %v919
    %v1501 = vmul.f32 %v1500, %v1499
    %v1502 = vmul.f32 0.5, %v1501
    %v1503 = vsub.f32 1.5, %v1502
    %v1504 = vmul.f32 %v1499, %v1503
    %v1505 = vmul.f32 %v919, %v1504
    %vm1506 = vcmp.eq.f32.partialorder %v919, inf
    %v1507 = vsel %vm1506, %v919, %v1505
    %vm1508 = vcmp.eq.f32.partialorder %v919, 0.0
    %v1509 = vand.u32 %v919, 2147483648
    %v1510 = vsel %vm1508, %v1509, %v1507
    %v1511 = vrsqrt.pop %v922
    %v1512 = vmul.f32 %v1511, %v922
    %v1513 = vmul.f32 %v1512, %v1511
    %v1514 = vmul.f32 0.5, %v1513
    %v1515 = vsub.f32 1.5, %v1514
    %v1516 = vmul.f32 %v1511, %v1515
    %v1517 = vmul.f32 %v922, %v1516
    %vm1518 = vcmp.eq.f32.partialorder %v922, inf
    %v1519 = vsel %vm1518, %v922, %v1517
    %vm1520 = vcmp.eq.f32.partialorder %v922, 0.0
    %v1521 = vand.u32 %v922, 2147483648
    %v1522 = vsel %vm1520, %v1521, %v1519
    %v1523 = vrsqrt.pop %v925
    %v1524 = vmul.f32 %v1523, %v925
    %v1525 = vmul.f32 %v1524, %v1523
    %v1526 = vmul.f32 0.5, %v1525
    %v1527 = vsub.f32 1.5, %v1526
    %v1528 = vmul.f32 %v1523, %v1527
    %v1529 = vmul.f32 %v925, %v1528
    %vm1530 = vcmp.eq.f32.partialorder %v925, inf
    %v1531 = vsel %vm1530, %v925, %v1529
    %vm1532 = vcmp.eq.f32.partialorder %v925, 0.0
    %v1533 = vand.u32 %v925, 2147483648
    %v1534 = vsel %vm1532, %v1533, %v1531
    %v1535 = vrsqrt.pop %v928
    %v1536 = vmul.f32 %v1535, %v928
    %v1537 = vmul.f32 %v1536, %v1535
    %v1538 = vmul.f32 0.5, %v1537
    %v1539 = vsub.f32 1.5, %v1538
    %v1540 = vmul.f32 %v1535, %v1539
    %v1541 = vmul.f32 %v928, %v1540
    %vm1542 = vcmp.eq.f32.partialorder %v928, inf
    %v1543 = vsel %vm1542, %v928, %v1541
    %vm1544 = vcmp.eq.f32.partialorder %v928, 0.0
    %v1545 = vand.u32 %v928, 2147483648
    %v1546 = vsel %vm1544, %v1545, %v1543
    %v1547 = vrsqrt.pop %v931
    %v1548 = vmul.f32 %v1547, %v931
    %v1549 = vmul.f32 %v1548, %v1547
    %v1550 = vmul.f32 0.5, %v1549
    %v1551 = vsub.f32 1.5, %v1550
    %v1552 = vmul.f32 %v1547, %v1551
    %v1553 = vmul.f32 %v931, %v1552
    %vm1554 = vcmp.eq.f32.partialorder %v931, inf
    %v1555 = vsel %vm1554, %v931, %v1553
    %vm1556 = vcmp.eq.f32.partialorder %v931, 0.0
    %v1557 = vand.u32 %v931, 2147483648
    %v1558 = vsel %vm1556, %v1557, %v1555
    %v1559 = vrsqrt.pop %v934
    %v1560 = vmul.f32 %v1559, %v934
    %v1561 = vmul.f32 %v1560, %v1559
    %v1562 = vmul.f32 0.5, %v1561
    %v1563 = vsub.f32 1.5, %v1562
    %v1564 = vmul.f32 %v1559, %v1563
    %v1565 = vmul.f32 %v934, %v1564
    %vm1566 = vcmp.eq.f32.partialorder %v934, inf
    %v1567 = vsel %vm1566, %v934, %v1565
    %vm1568 = vcmp.eq.f32.partialorder %v934, 0.0
    %v1569 = vand.u32 %v934, 2147483648
    %v1570 = vsel %vm1568, %v1569, %v1567
    %v1571 = vrsqrt.pop %v937
    %v1572 = vmul.f32 %v1571, %v937
    %v1573 = vmul.f32 %v1572, %v1571
    %v1574 = vmul.f32 0.5, %v1573
    %v1575 = vsub.f32 1.5, %v1574
    %v1576 = vmul.f32 %v1571, %v1575
    %v1577 = vmul.f32 %v937, %v1576
    %vm1578 = vcmp.eq.f32.partialorder %v937, inf
    %v1579 = vsel %vm1578, %v937, %v1577
    %vm1580 = vcmp.eq.f32.partialorder %v937, 0.0
    %v1581 = vand.u32 %v937, 2147483648
    %v1582 = vsel %vm1580, %v1581, %v1579
    %v1583 = vrsqrt.pop %v940
    %v1584 = vmul.f32 %v1583, %v940
    %v1585 = vmul.f32 %v1584, %v1583
    %v1586 = vmul.f32 0.5, %v1585
    %v1587 = vsub.f32 1.5, %v1586
    %v1588 = vmul.f32 %v1583, %v1587
    %v1589 = vmul.f32 %v940, %v1588
    %vm1590 = vcmp.eq.f32.partialorder %v940, inf
    %v1591 = vsel %vm1590, %v940, %v1589
    %vm1592 = vcmp.eq.f32.partialorder %v940, 0.0
    %v1593 = vand.u32 %v940, 2147483648
    %v1594 = vsel %vm1592, %v1593, %v1591
    %v1595 = vrsqrt.pop %v943
    %v1596 = vmul.f32 %v1595, %v943
    %v1597 = vmul.f32 %v1596, %v1595
    %v1598 = vmul.f32 0.5, %v1597
    %v1599 = vsub.f32 1.5, %v1598
    %v1600 = vmul.f32 %v1595, %v1599
    %v1601 = vmul.f32 %v943, %v1600
    %vm1602 = vcmp.eq.f32.partialorder %v943, inf
    %v1603 = vsel %vm1602, %v943, %v1601
    %vm1604 = vcmp.eq.f32.partialorder %v943, 0.0
    %v1605 = vand.u32 %v943, 2147483648
    %v1606 = vsel %vm1604, %v1605, %v1603
    %v1607 = vrsqrt.pop %v946
    %v1608 = vmul.f32 %v1607, %v946
    %v1609 = vmul.f32 %v1608, %v1607
    %v1610 = vmul.f32 0.5, %v1609
    %v1611 = vsub.f32 1.5, %v1610
    %v1612 = vmul.f32 %v1607, %v1611
    %v1613 = vmul.f32 %v946, %v1612
    %vm1614 = vcmp.eq.f32.partialorder %v946, inf
    %v1615 = vsel %vm1614, %v946, %v1613
    %vm1616 = vcmp.eq.f32.partialorder %v946, 0.0
    %v1617 = vand.u32 %v946, 2147483648
    %v1618 = vsel %vm1616, %v1617, %v1615
    %v1619 = vrsqrt.pop %v949
    %v1620 = vmul.f32 %v1619, %v949
    %v1621 = vmul.f32 %v1620, %v1619
    %v1622 = vmul.f32 0.5, %v1621
    %v1623 = vsub.f32 1.5, %v1622
    %v1624 = vmul.f32 %v1619, %v1623
    %v1625 = vmul.f32 %v949, %v1624
    %vm1626 = vcmp.eq.f32.partialorder %v949, inf
    %v1627 = vsel %vm1626, %v949, %v1625
    %vm1628 = vcmp.eq.f32.partialorder %v949, 0.0
    %v1629 = vand.u32 %v949, 2147483648
    %v1630 = vsel %vm1628, %v1629, %v1627
    %v1631 = vrsqrt.pop %v952
    %v1632 = vmul.f32 %v1631, %v952
    %v1633 = vmul.f32 %v1632, %v1631
    %v1634 = vmul.f32 0.5, %v1633
    %v1635 = vsub.f32 1.5, %v1634
    %v1636 = vmul.f32 %v1631, %v1635
    %v1637 = vmul.f32 %v952, %v1636
    %vm1638 = vcmp.eq.f32.partialorder %v952, inf
    %v1639 = vsel %vm1638, %v952, %v1637
    %vm1640 = vcmp.eq.f32.partialorder %v952, 0.0
    %v1641 = vand.u32 %v952, 2147483648
    %v1642 = vsel %vm1640, %v1641, %v1639
    %v1643 = vrsqrt.pop %v955
    %v1644 = vmul.f32 %v1643, %v955
    %v1645 = vmul.f32 %v1644, %v1643
    %v1646 = vmul.f32 0.5, %v1645
    %v1647 = vsub.f32 1.5, %v1646
    %v1648 = vmul.f32 %v1643, %v1647
    %v1649 = vmul.f32 %v955, %v1648
    %vm1650 = vcmp.eq.f32.partialorder %v955, inf
    %v1651 = vsel %vm1650, %v955, %v1649
    %vm1652 = vcmp.eq.f32.partialorder %v955, 0.0
    %v1653 = vand.u32 %v955, 2147483648
    %v1654 = vsel %vm1652, %v1653, %v1651
    %v1655 = vrsqrt.pop %v958
    %v1656 = vmul.f32 %v1655, %v958
    %v1657 = vmul.f32 %v1656, %v1655
    %v1658 = vmul.f32 0.5, %v1657
    %v1659 = vsub.f32 1.5, %v1658
    %v1660 = vmul.f32 %v1655, %v1659
    %v1661 = vmul.f32 %v958, %v1660
    %vm1662 = vcmp.eq.f32.partialorder %v958, inf
    %v1663 = vsel %vm1662, %v958, %v1661
    %vm1664 = vcmp.eq.f32.partialorder %v958, 0.0
    %v1665 = vand.u32 %v958, 2147483648
    %v1666 = vsel %vm1664, %v1665, %v1663
    %v1667 = vrsqrt.pop %v961
    %v1668 = vmul.f32 %v1667, %v961
    %v1669 = vmul.f32 %v1668, %v1667
    %v1670 = vmul.f32 0.5, %v1669
    %v1671 = vsub.f32 1.5, %v1670
    %v1672 = vmul.f32 %v1667, %v1671
    %v1673 = vmul.f32 %v961, %v1672
    %vm1674 = vcmp.eq.f32.partialorder %v961, inf
    %v1675 = vsel %vm1674, %v961, %v1673
    %vm1676 = vcmp.eq.f32.partialorder %v961, 0.0
    %v1677 = vand.u32 %v961, 2147483648
    %v1678 = vsel %vm1676, %v1677, %v1675
    %v1679 = vrsqrt.pop %v964
    %v1680 = vmul.f32 %v1679, %v964
    %v1681 = vmul.f32 %v1680, %v1679
    %v1682 = vmul.f32 0.5, %v1681
    %v1683 = vsub.f32 1.5, %v1682
    %v1684 = vmul.f32 %v1679, %v1683
    %v1685 = vmul.f32 %v964, %v1684
    %vm1686 = vcmp.eq.f32.partialorder %v964, inf
    %v1687 = vsel %vm1686, %v964, %v1685
    %vm1688 = vcmp.eq.f32.partialorder %v964, 0.0
    %v1689 = vand.u32 %v964, 2147483648
    %v1690 = vsel %vm1688, %v1689, %v1687
    %v1691 = vrsqrt.pop %v967
    %v1692 = vmul.f32 %v1691, %v967
    %v1693 = vmul.f32 %v1692, %v1691
    %v1694 = vmul.f32 0.5, %v1693
    %v1695 = vsub.f32 1.5, %v1694
    %v1696 = vmul.f32 %v1691, %v1695
    %v1697 = vmul.f32 %v967, %v1696
    %vm1698 = vcmp.eq.f32.partialorder %v967, inf
    %v1699 = vsel %vm1698, %v967, %v1697
    %vm1700 = vcmp.eq.f32.partialorder %v967, 0.0
    %v1701 = vand.u32 %v967, 2147483648
    %v1702 = vsel %vm1700, %v1701, %v1699
    %v1703 = vrsqrt.pop %v970
    %v1704 = vmul.f32 %v1703, %v970
    %v1705 = vmul.f32 %v1704, %v1703
    %v1706 = vmul.f32 0.5, %v1705
    %v1707 = vsub.f32 1.5, %v1706
    %v1708 = vmul.f32 %v1703, %v1707
    %v1709 = vmul.f32 %v970, %v1708
    %vm1710 = vcmp.eq.f32.partialorder %v970, inf
    %v1711 = vsel %vm1710, %v970, %v1709
    %vm1712 = vcmp.eq.f32.partialorder %v970, 0.0
    %v1713 = vand.u32 %v970, 2147483648
    %v1714 = vsel %vm1712, %v1713, %v1711
    %v1715 = vrsqrt.pop %v973
    %v1716 = vmul.f32 %v1715, %v973
    %v1717 = vmul.f32 %v1716, %v1715
    %v1718 = vmul.f32 0.5, %v1717
    %v1719 = vsub.f32 1.5, %v1718
    %v1720 = vmul.f32 %v1715, %v1719
    %v1721 = vmul.f32 %v973, %v1720
    %vm1722 = vcmp.eq.f32.partialorder %v973, inf
    %v1723 = vsel %vm1722, %v973, %v1721
    %vm1724 = vcmp.eq.f32.partialorder %v973, 0.0
    %v1725 = vand.u32 %v973, 2147483648
    %v1726 = vsel %vm1724, %v1725, %v1723
    %v1727 = vrsqrt.pop %v976
    %v1728 = vmul.f32 %v1727, %v976
    %v1729 = vmul.f32 %v1728, %v1727
    %v1730 = vmul.f32 0.5, %v1729
    %v1731 = vsub.f32 1.5, %v1730
    %v1732 = vmul.f32 %v1727, %v1731
    %v1733 = vmul.f32 %v976, %v1732
    %vm1734 = vcmp.eq.f32.partialorder %v976, inf
    %v1735 = vsel %vm1734, %v976, %v1733
    %vm1736 = vcmp.eq.f32.partialorder %v976, 0.0
    %v1737 = vand.u32 %v976, 2147483648
    %v1738 = vsel %vm1736, %v1737, %v1735
    %v1739 = vrsqrt.pop %v979
    %v1740 = vmul.f32 %v1739, %v979
    %v1741 = vmul.f32 %v1740, %v1739
    %v1742 = vmul.f32 0.5, %v1741
    %v1743 = vsub.f32 1.5, %v1742
    %v1744 = vmul.f32 %v1739, %v1743
    %v1745 = vmul.f32 %v979, %v1744
    %vm1746 = vcmp.eq.f32.partialorder %v979, inf
    %v1747 = vsel %vm1746, %v979, %v1745
    %vm1748 = vcmp.eq.f32.partialorder %v979, 0.0
    %v1749 = vand.u32 %v979, 2147483648
    %v1750 = vsel %vm1748, %v1749, %v1747
    %v1751 = vrsqrt.pop %v982
    %v1752 = vmul.f32 %v1751, %v982
    %v1753 = vmul.f32 %v1752, %v1751
    %v1754 = vmul.f32 0.5, %v1753
    %v1755 = vsub.f32 1.5, %v1754
    %v1756 = vmul.f32 %v1751, %v1755
    %v1757 = vmul.f32 %v982, %v1756
    %vm1758 = vcmp.eq.f32.partialorder %v982, inf
    %v1759 = vsel %vm1758, %v982, %v1757
    %vm1760 = vcmp.eq.f32.partialorder %v982, 0.0
    %v1761 = vand.u32 %v982, 2147483648
    %v1762 = vsel %vm1760, %v1761, %v1759
    %v1763 = vrsqrt.pop %v985
    %v1764 = vmul.f32 %v1763, %v985
    %v1765 = vmul.f32 %v1764, %v1763
    %v1766 = vmul.f32 0.5, %v1765
    %v1767 = vsub.f32 1.5, %v1766
    %v1768 = vmul.f32 %v1763, %v1767
    %v1769 = vmul.f32 %v985, %v1768
    %vm1770 = vcmp.eq.f32.partialorder %v985, inf
    %v1771 = vsel %vm1770, %v985, %v1769
    %vm1772 = vcmp.eq.f32.partialorder %v985, 0.0
    %v1773 = vand.u32 %v985, 2147483648
    %v1774 = vsel %vm1772, %v1773, %v1771
    %v1775 = vrsqrt.pop %v988
    %v1776 = vmul.f32 %v1775, %v988
    %v1777 = vmul.f32 %v1776, %v1775
    %v1778 = vmul.f32 0.5, %v1777
    %v1779 = vsub.f32 1.5, %v1778
    %v1780 = vmul.f32 %v1775, %v1779
    %v1781 = vmul.f32 %v988, %v1780
    %vm1782 = vcmp.eq.f32.partialorder %v988, inf
    %v1783 = vsel %vm1782, %v988, %v1781
    %vm1784 = vcmp.eq.f32.partialorder %v988, 0.0
    %v1785 = vand.u32 %v988, 2147483648
    %v1786 = vsel %vm1784, %v1785, %v1783
    %v1787 = vrsqrt.pop %v991
    %v1788 = vmul.f32 %v1787, %v991
    %v1789 = vmul.f32 %v1788, %v1787
    %v1790 = vmul.f32 0.5, %v1789
    %v1791 = vsub.f32 1.5, %v1790
    %v1792 = vmul.f32 %v1787, %v1791
    %v1793 = vmul.f32 %v991, %v1792
    %vm1794 = vcmp.eq.f32.partialorder %v991, inf
    %v1795 = vsel %vm1794, %v991, %v1793
    %vm1796 = vcmp.eq.f32.partialorder %v991, 0.0
    %v1797 = vand.u32 %v991, 2147483648
    %v1798 = vsel %vm1796, %v1797, %v1795
    %v1799 = vrsqrt.pop %v994
    %v1800 = vmul.f32 %v1799, %v994
    %v1801 = vmul.f32 %v1800, %v1799
    %v1802 = vmul.f32 0.5, %v1801
    %v1803 = vsub.f32 1.5, %v1802
    %v1804 = vmul.f32 %v1799, %v1803
    %v1805 = vmul.f32 %v994, %v1804
    %vm1806 = vcmp.eq.f32.partialorder %v994, inf
    %v1807 = vsel %vm1806, %v994, %v1805
    %vm1808 = vcmp.eq.f32.partialorder %v994, 0.0
    %v1809 = vand.u32 %v994, 2147483648
    %v1810 = vsel %vm1808, %v1809, %v1807
    %v1811 = vrsqrt.pop %v997
    %v1812 = vmul.f32 %v1811, %v997
    %v1813 = vmul.f32 %v1812, %v1811
    %v1814 = vmul.f32 0.5, %v1813
    %v1815 = vsub.f32 1.5, %v1814
    %v1816 = vmul.f32 %v1811, %v1815
    %v1817 = vmul.f32 %v997, %v1816
    %vm1818 = vcmp.eq.f32.partialorder %v997, inf
    %v1819 = vsel %vm1818, %v997, %v1817
    %vm1820 = vcmp.eq.f32.partialorder %v997, 0.0
    %v1821 = vand.u32 %v997, 2147483648
    %v1822 = vsel %vm1820, %v1821, %v1819
    %v1823 = vrsqrt.pop %v1000
    %v1824 = vmul.f32 %v1823, %v1000
    %v1825 = vmul.f32 %v1824, %v1823
    %v1826 = vmul.f32 0.5, %v1825
    %v1827 = vsub.f32 1.5, %v1826
    %v1828 = vmul.f32 %v1823, %v1827
    %v1829 = vmul.f32 %v1000, %v1828
    %vm1830 = vcmp.eq.f32.partialorder %v1000, inf
    %v1831 = vsel %vm1830, %v1000, %v1829
    %vm1832 = vcmp.eq.f32.partialorder %v1000, 0.0
    %v1833 = vand.u32 %v1000, 2147483648
    %v1834 = vsel %vm1832, %v1833, %v1831
    %v1835 = vrsqrt.pop %v1003
    %v1836 = vmul.f32 %v1835, %v1003
    %v1837 = vmul.f32 %v1836, %v1835
    %v1838 = vmul.f32 0.5, %v1837
    %v1839 = vsub.f32 1.5, %v1838
    %v1840 = vmul.f32 %v1835, %v1839
    %v1841 = vmul.f32 %v1003, %v1840
    %vm1842 = vcmp.eq.f32.partialorder %v1003, inf
    %v1843 = vsel %vm1842, %v1003, %v1841
    %vm1844 = vcmp.eq.f32.partialorder %v1003, 0.0
    %v1845 = vand.u32 %v1003, 2147483648
    %v1846 = vsel %vm1844, %v1845, %v1843
    %v1847 = vrsqrt.pop %v1006
    %v1848 = vmul.f32 %v1847, %v1006
    %v1849 = vmul.f32 %v1848, %v1847
    %v1850 = vmul.f32 0.5, %v1849
    %v1851 = vsub.f32 1.5, %v1850
    %v1852 = vmul.f32 %v1847, %v1851
    %v1853 = vmul.f32 %v1006, %v1852
    %vm1854 = vcmp.eq.f32.partialorder %v1006, inf
    %v1855 = vsel %vm1854, %v1006, %v1853
    %vm1856 = vcmp.eq.f32.partialorder %v1006, 0.0
    %v1857 = vand.u32 %v1006, 2147483648
    %v1858 = vsel %vm1856, %v1857, %v1855
    %v1859 = vrsqrt.pop %v1009
    %v1860 = vmul.f32 %v1859, %v1009
    %v1861 = vmul.f32 %v1860, %v1859
    %v1862 = vmul.f32 0.5, %v1861
    %v1863 = vsub.f32 1.5, %v1862
    %v1864 = vmul.f32 %v1859, %v1863
    %v1865 = vmul.f32 %v1009, %v1864
    %vm1866 = vcmp.eq.f32.partialorder %v1009, inf
    %v1867 = vsel %vm1866, %v1009, %v1865
    %vm1868 = vcmp.eq.f32.partialorder %v1009, 0.0
    %v1869 = vand.u32 %v1009, 2147483648
    %v1870 = vsel %vm1868, %v1869, %v1867
    %v1871 = vrsqrt.pop %v1012
    %v1872 = vmul.f32 %v1871, %v1012
    %v1873 = vmul.f32 %v1872, %v1871
    %v1874 = vmul.f32 0.5, %v1873
    %v1875 = vsub.f32 1.5, %v1874
    %v1876 = vmul.f32 %v1871, %v1875
    %v1877 = vmul.f32 %v1012, %v1876
    %vm1878 = vcmp.eq.f32.partialorder %v1012, inf
    %v1879 = vsel %vm1878, %v1012, %v1877
    %vm1880 = vcmp.eq.f32.partialorder %v1012, 0.0
    %v1881 = vand.u32 %v1012, 2147483648
    %v1882 = vsel %vm1880, %v1881, %v1879
    %v1883 = vrsqrt.pop %v1015
    %v1884 = vmul.f32 %v1883, %v1015
    %v1885 = vmul.f32 %v1884, %v1883
    %v1886 = vmul.f32 0.5, %v1885
    %v1887 = vsub.f32 1.5, %v1886
    %v1888 = vmul.f32 %v1883, %v1887
    %v1889 = vmul.f32 %v1015, %v1888
    %vm1890 = vcmp.eq.f32.partialorder %v1015, inf
    %v1891 = vsel %vm1890, %v1015, %v1889
    %vm1892 = vcmp.eq.f32.partialorder %v1015, 0.0
    %v1893 = vand.u32 %v1015, 2147483648
    %v1894 = vsel %vm1892, %v1893, %v1891
    %v1895 = vrsqrt.pop %v1018
    %v1896 = vmul.f32 %v1895, %v1018
    %v1897 = vmul.f32 %v1896, %v1895
    %v1898 = vmul.f32 0.5, %v1897
    %v1899 = vsub.f32 1.5, %v1898
    %v1900 = vmul.f32 %v1895, %v1899
    %v1901 = vmul.f32 %v1018, %v1900
    %vm1902 = vcmp.eq.f32.partialorder %v1018, inf
    %v1903 = vsel %vm1902, %v1018, %v1901
    %vm1904 = vcmp.eq.f32.partialorder %v1018, 0.0
    %v1905 = vand.u32 %v1018, 2147483648
    %v1906 = vsel %vm1904, %v1905, %v1903
    %v1907 = vrsqrt.pop %v1021
    %v1908 = vmul.f32 %v1907, %v1021
    %v1909 = vmul.f32 %v1908, %v1907
    %v1910 = vmul.f32 0.5, %v1909
    %v1911 = vsub.f32 1.5, %v1910
    %v1912 = vmul.f32 %v1907, %v1911
    %v1913 = vmul.f32 %v1021, %v1912
    %vm1914 = vcmp.eq.f32.partialorder %v1021, inf
    %v1915 = vsel %vm1914, %v1021, %v1913
    %vm1916 = vcmp.eq.f32.partialorder %v1021, 0.0
    %v1917 = vand.u32 %v1021, 2147483648
    %v1918 = vsel %vm1916, %v1917, %v1915
    %v1919 = vrsqrt.pop %v1024
    %v1920 = vmul.f32 %v1919, %v1024
    %v1921 = vmul.f32 %v1920, %v1919
    %v1922 = vmul.f32 0.5, %v1921
    %v1923 = vsub.f32 1.5, %v1922
    %v1924 = vmul.f32 %v1919, %v1923
    %v1925 = vmul.f32 %v1024, %v1924
    %vm1926 = vcmp.eq.f32.partialorder %v1024, inf
    %v1927 = vsel %vm1926, %v1024, %v1925
    %vm1928 = vcmp.eq.f32.partialorder %v1024, 0.0
    %v1929 = vand.u32 %v1024, 2147483648
    %v1930 = vsel %vm1928, %v1929, %v1927
    %v1931 = vrsqrt.pop %v1027
    %v1932 = vmul.f32 %v1931, %v1027
    %v1933 = vmul.f32 %v1932, %v1931
    %v1934 = vmul.f32 0.5, %v1933
    %v1935 = vsub.f32 1.5, %v1934
    %v1936 = vmul.f32 %v1931, %v1935
    %v1937 = vmul.f32 %v1027, %v1936
    %vm1938 = vcmp.eq.f32.partialorder %v1027, inf
    %v1939 = vsel %vm1938, %v1027, %v1937
    %vm1940 = vcmp.eq.f32.partialorder %v1027, 0.0
    %v1941 = vand.u32 %v1027, 2147483648
    %v1942 = vsel %vm1940, %v1941, %v1939
    %v1943 = vrsqrt.pop %v1030
    %v1944 = vmul.f32 %v1943, %v1030
    %v1945 = vmul.f32 %v1944, %v1943
    %v1946 = vmul.f32 0.5, %v1945
    %v1947 = vsub.f32 1.5, %v1946
    %v1948 = vmul.f32 %v1943, %v1947
    %v1949 = vmul.f32 %v1030, %v1948
    %vm1950 = vcmp.eq.f32.partialorder %v1030, inf
    %v1951 = vsel %vm1950, %v1030, %v1949
    %vm1952 = vcmp.eq.f32.partialorder %v1030, 0.0
    %v1953 = vand.u32 %v1030, 2147483648
    %v1954 = vsel %vm1952, %v1953, %v1951
    %v1955 = vrsqrt.pop %v1033
    %v1956 = vmul.f32 %v1955, %v1033
    %v1957 = vmul.f32 %v1956, %v1955
    %v1958 = vmul.f32 0.5, %v1957
    %v1959 = vsub.f32 1.5, %v1958
    %v1960 = vmul.f32 %v1955, %v1959
    %v1961 = vmul.f32 %v1033, %v1960
    %vm1962 = vcmp.eq.f32.partialorder %v1033, inf
    %v1963 = vsel %vm1962, %v1033, %v1961
    %vm1964 = vcmp.eq.f32.partialorder %v1033, 0.0
    %v1965 = vand.u32 %v1033, 2147483648
    %v1966 = vsel %vm1964, %v1965, %v1963
    %v1967 = vrsqrt.pop %v1036
    %v1968 = vmul.f32 %v1967, %v1036
    %v1969 = vmul.f32 %v1968, %v1967
    %v1970 = vmul.f32 0.5, %v1969
    %v1971 = vsub.f32 1.5, %v1970
    %v1972 = vmul.f32 %v1967, %v1971
    %v1973 = vmul.f32 %v1036, %v1972
    %vm1974 = vcmp.eq.f32.partialorder %v1036, inf
    %v1975 = vsel %vm1974, %v1036, %v1973
    %vm1976 = vcmp.eq.f32.partialorder %v1036, 0.0
    %v1977 = vand.u32 %v1036, 2147483648
    %v1978 = vsel %vm1976, %v1977, %v1975
    %v1979 = vrsqrt.pop %v1039
    %v1980 = vmul.f32 %v1979, %v1039
    %v1981 = vmul.f32 %v1980, %v1979
    %v1982 = vmul.f32 0.5, %v1981
    %v1983 = vsub.f32 1.5, %v1982
    %v1984 = vmul.f32 %v1979, %v1983
    %v1985 = vmul.f32 %v1039, %v1984
    %vm1986 = vcmp.eq.f32.partialorder %v1039, inf
    %v1987 = vsel %vm1986, %v1039, %v1985
    %vm1988 = vcmp.eq.f32.partialorder %v1039, 0.0
    %v1989 = vand.u32 %v1039, 2147483648
    %v1990 = vsel %vm1988, %v1989, %v1987
    %v1991 = vrsqrt.pop %v1042
    %v1992 = vmul.f32 %v1991, %v1042
    %v1993 = vmul.f32 %v1992, %v1991
    %v1994 = vmul.f32 0.5, %v1993
    %v1995 = vsub.f32 1.5, %v1994
    %v1996 = vmul.f32 %v1991, %v1995
    %v1997 = vmul.f32 %v1042, %v1996
    %vm1998 = vcmp.eq.f32.partialorder %v1042, inf
    %v1999 = vsel %vm1998, %v1042, %v1997
    %vm2000 = vcmp.eq.f32.partialorder %v1042, 0.0
    %v2001 = vand.u32 %v1042, 2147483648
    %v2002 = vsel %vm2000, %v2001, %v1999
    %v2003 = vrsqrt.pop %v1045
    %v2004 = vmul.f32 %v2003, %v1045
    %v2005 = vmul.f32 %v2004, %v2003
    %v2006 = vmul.f32 0.5, %v2005
    %v2007 = vsub.f32 1.5, %v2006
    %v2008 = vmul.f32 %v2003, %v2007
    %v2009 = vmul.f32 %v1045, %v2008
    %vm2010 = vcmp.eq.f32.partialorder %v1045, inf
    %v2011 = vsel %vm2010, %v1045, %v2009
    %vm2012 = vcmp.eq.f32.partialorder %v1045, 0.0
    %v2013 = vand.u32 %v1045, 2147483648
    %v2014 = vsel %vm2012, %v2013, %v2011
    %v2015 = vrsqrt.pop %v1048
    %v2016 = vmul.f32 %v2015, %v1048
    %v2017 = vmul.f32 %v2016, %v2015
    %v2018 = vmul.f32 0.5, %v2017
    %v2019 = vsub.f32 1.5, %v2018
    %v2020 = vmul.f32 %v2015, %v2019
    %v2021 = vmul.f32 %v1048, %v2020
    %vm2022 = vcmp.eq.f32.partialorder %v1048, inf
    %v2023 = vsel %vm2022, %v1048, %v2021
    %vm2024 = vcmp.eq.f32.partialorder %v1048, 0.0
    %v2025 = vand.u32 %v1048, 2147483648
    %v2026 = vsel %vm2024, %v2025, %v2023
    %v2027 = vrsqrt.pop %v1051
    %v2028 = vmul.f32 %v2027, %v1051
    %v2029 = vmul.f32 %v2028, %v2027
    %v2030 = vmul.f32 0.5, %v2029
    %v2031 = vsub.f32 1.5, %v2030
    %v2032 = vmul.f32 %v2027, %v2031
    %v2033 = vmul.f32 %v1051, %v2032
    %vm2034 = vcmp.eq.f32.partialorder %v1051, inf
    %v2035 = vsel %vm2034, %v1051, %v2033
    %vm2036 = vcmp.eq.f32.partialorder %v1051, 0.0
    %v2037 = vand.u32 %v1051, 2147483648
    %v2038 = vsel %vm2036, %v2037, %v2035
    %v2039 = vrsqrt.pop %v1054
    %v2040 = vmul.f32 %v2039, %v1054
    %v2041 = vmul.f32 %v2040, %v2039
    %v2042 = vmul.f32 0.5, %v2041
    %v2043 = vsub.f32 1.5, %v2042
    %v2044 = vmul.f32 %v2039, %v2043
    %v2045 = vmul.f32 %v1054, %v2044
    %vm2046 = vcmp.eq.f32.partialorder %v1054, inf
    %v2047 = vsel %vm2046, %v1054, %v2045
    %vm2048 = vcmp.eq.f32.partialorder %v1054, 0.0
    %v2049 = vand.u32 %v1054, 2147483648
    %v2050 = vsel %vm2048, %v2049, %v2047
    %v2051 = vrsqrt.pop %v1057
    %v2052 = vmul.f32 %v2051, %v1057
    %v2053 = vmul.f32 %v2052, %v2051
    %v2054 = vmul.f32 0.5, %v2053
    %v2055 = vsub.f32 1.5, %v2054
    %v2056 = vmul.f32 %v2051, %v2055
    %v2057 = vmul.f32 %v1057, %v2056
    %vm2058 = vcmp.eq.f32.partialorder %v1057, inf
    %v2059 = vsel %vm2058, %v1057, %v2057
    %vm2060 = vcmp.eq.f32.partialorder %v1057, 0.0
    %v2061 = vand.u32 %v1057, 2147483648
    %v2062 = vsel %vm2060, %v2061, %v2059
    %v2063 = vrsqrt.pop %v1060
    %v2064 = vmul.f32 %v2063, %v1060
    %v2065 = vmul.f32 %v2064, %v2063
    %v2066 = vmul.f32 0.5, %v2065
    %v2067 = vsub.f32 1.5, %v2066
    %v2068 = vmul.f32 %v2063, %v2067
    %v2069 = vmul.f32 %v1060, %v2068
    %vm2070 = vcmp.eq.f32.partialorder %v1060, inf
    %v2071 = vsel %vm2070, %v1060, %v2069
    %vm2072 = vcmp.eq.f32.partialorder %v1060, 0.0
    %v2073 = vand.u32 %v1060, 2147483648
    %v2074 = vsel %vm2072, %v2073, %v2071
    %v2075 = vrsqrt.pop %v1063
    %v2076 = vmul.f32 %v2075, %v1063
    %v2077 = vmul.f32 %v2076, %v2075
    %v2078 = vmul.f32 0.5, %v2077
    %v2079 = vsub.f32 1.5, %v2078
    %v2080 = vmul.f32 %v2075, %v2079
    %v2081 = vmul.f32 %v1063, %v2080
    %vm2082 = vcmp.eq.f32.partialorder %v1063, inf
    %v2083 = vsel %vm2082, %v1063, %v2081
    %vm2084 = vcmp.eq.f32.partialorder %v1063, 0.0
    %v2085 = vand.u32 %v1063, 2147483648
    %v2086 = vsel %vm2084, %v2085, %v2083
    %v2087 = vrsqrt.pop %v1066
    %v2088 = vmul.f32 %v2087, %v1066
    %v2089 = vmul.f32 %v2088, %v2087
    %v2090 = vmul.f32 0.5, %v2089
    %v2091 = vsub.f32 1.5, %v2090
    %v2092 = vmul.f32 %v2087, %v2091
    %v2093 = vmul.f32 %v1066, %v2092
    %vm2094 = vcmp.eq.f32.partialorder %v1066, inf
    %v2095 = vsel %vm2094, %v1066, %v2093
    %vm2096 = vcmp.eq.f32.partialorder %v1066, 0.0
    %v2097 = vand.u32 %v1066, 2147483648
    %v2098 = vsel %vm2096, %v2097, %v2095
    %v2099 = vrsqrt.pop %v1069
    %v2100 = vmul.f32 %v2099, %v1069
    %v2101 = vmul.f32 %v2100, %v2099
    %v2102 = vmul.f32 0.5, %v2101
    %v2103 = vsub.f32 1.5, %v2102
    %v2104 = vmul.f32 %v2099, %v2103
    %v2105 = vmul.f32 %v1069, %v2104
    %vm2106 = vcmp.eq.f32.partialorder %v1069, inf
    %v2107 = vsel %vm2106, %v1069, %v2105
    %vm2108 = vcmp.eq.f32.partialorder %v1069, 0.0
    %v2109 = vand.u32 %v1069, 2147483648
    %v2110 = vsel %vm2108, %v2109, %v2107
    %v2111 = vrsqrt.pop %v1072
    %v2112 = vmul.f32 %v2111, %v1072
    %v2113 = vmul.f32 %v2112, %v2111
    %v2114 = vmul.f32 0.5, %v2113
    %v2115 = vsub.f32 1.5, %v2114
    %v2116 = vmul.f32 %v2111, %v2115
    %v2117 = vmul.f32 %v1072, %v2116
    %vm2118 = vcmp.eq.f32.partialorder %v1072, inf
    %v2119 = vsel %vm2118, %v1072, %v2117
    %vm2120 = vcmp.eq.f32.partialorder %v1072, 0.0
    %v2121 = vand.u32 %v1072, 2147483648
    %v2122 = vsel %vm2120, %v2121, %v2119
    %v2123 = vrsqrt.pop %v1075
    %v2124 = vmul.f32 %v2123, %v1075
    %v2125 = vmul.f32 %v2124, %v2123
    %v2126 = vmul.f32 0.5, %v2125
    %v2127 = vsub.f32 1.5, %v2126
    %v2128 = vmul.f32 %v2123, %v2127
    %v2129 = vmul.f32 %v1075, %v2128
    %vm2130 = vcmp.eq.f32.partialorder %v1075, inf
    %v2131 = vsel %vm2130, %v1075, %v2129
    %vm2132 = vcmp.eq.f32.partialorder %v1075, 0.0
    %v2133 = vand.u32 %v1075, 2147483648
    %v2134 = vsel %vm2132, %v2133, %v2131
    %v2135 = vrsqrt.pop %v1078
    %v2136 = vmul.f32 %v2135, %v1078
    %v2137 = vmul.f32 %v2136, %v2135
    %v2138 = vmul.f32 0.5, %v2137
    %v2139 = vsub.f32 1.5, %v2138
    %v2140 = vmul.f32 %v2135, %v2139
    %v2141 = vmul.f32 %v1078, %v2140
    %vm2142 = vcmp.eq.f32.partialorder %v1078, inf
    %v2143 = vsel %vm2142, %v1078, %v2141
    %vm2144 = vcmp.eq.f32.partialorder %v1078, 0.0
    %v2145 = vand.u32 %v1078, 2147483648
    %v2146 = vsel %vm2144, %v2145, %v2143
    %v2147 = vrsqrt.pop %v1081
    %v2148 = vmul.f32 %v2147, %v1081
    %v2149 = vmul.f32 %v2148, %v2147
    %v2150 = vmul.f32 0.5, %v2149
    %v2151 = vsub.f32 1.5, %v2150
    %v2152 = vmul.f32 %v2147, %v2151
    %v2153 = vmul.f32 %v1081, %v2152
    %vm2154 = vcmp.eq.f32.partialorder %v1081, inf
    %v2155 = vsel %vm2154, %v1081, %v2153
    %vm2156 = vcmp.eq.f32.partialorder %v1081, 0.0
    %v2157 = vand.u32 %v1081, 2147483648
    %v2158 = vsel %vm2156, %v2157, %v2155
    %v2159 = vrsqrt.pop %v1084
    %v2160 = vmul.f32 %v2159, %v1084
    %v2161 = vmul.f32 %v2160, %v2159
    %v2162 = vmul.f32 0.5, %v2161
    %v2163 = vsub.f32 1.5, %v2162
    %v2164 = vmul.f32 %v2159, %v2163
    %v2165 = vmul.f32 %v1084, %v2164
    %vm2166 = vcmp.eq.f32.partialorder %v1084, inf
    %v2167 = vsel %vm2166, %v1084, %v2165
    %vm2168 = vcmp.eq.f32.partialorder %v1084, 0.0
    %v2169 = vand.u32 %v1084, 2147483648
    %v2170 = vsel %vm2168, %v2169, %v2167
    %v2171 = vrsqrt.pop %v1087
    %v2172 = vmul.f32 %v2171, %v1087
    %v2173 = vmul.f32 %v2172, %v2171
    %v2174 = vmul.f32 0.5, %v2173
    %v2175 = vsub.f32 1.5, %v2174
    %v2176 = vmul.f32 %v2171, %v2175
    %v2177 = vmul.f32 %v1087, %v2176
    %vm2178 = vcmp.eq.f32.partialorder %v1087, inf
    %v2179 = vsel %vm2178, %v1087, %v2177
    %vm2180 = vcmp.eq.f32.partialorder %v1087, 0.0
    %v2181 = vand.u32 %v1087, 2147483648
    %v2182 = vsel %vm2180, %v2181, %v2179
    %v2183 = vrsqrt.pop %v1090
    %v2184 = vmul.f32 %v2183, %v1090
    %v2185 = vmul.f32 %v2184, %v2183
    %v2186 = vmul.f32 0.5, %v2185
    %v2187 = vsub.f32 1.5, %v2186
    %v2188 = vmul.f32 %v2183, %v2187
    %v2189 = vmul.f32 %v1090, %v2188
    %vm2190 = vcmp.eq.f32.partialorder %v1090, inf
    %v2191 = vsel %vm2190, %v1090, %v2189
    %vm2192 = vcmp.eq.f32.partialorder %v1090, 0.0
    %v2193 = vand.u32 %v1090, 2147483648
    %v2194 = vsel %vm2192, %v2193, %v2191
    %v2195 = vrsqrt.pop %v1093
    %v2196 = vmul.f32 %v2195, %v1093
    %v2197 = vmul.f32 %v2196, %v2195
    %v2198 = vmul.f32 0.5, %v2197
    %v2199 = vsub.f32 1.5, %v2198
    %v2200 = vmul.f32 %v2195, %v2199
    %v2201 = vmul.f32 %v1093, %v2200
    %vm2202 = vcmp.eq.f32.partialorder %v1093, inf
    %v2203 = vsel %vm2202, %v1093, %v2201
    %vm2204 = vcmp.eq.f32.partialorder %v1093, 0.0
    %v2205 = vand.u32 %v1093, 2147483648
    %v2206 = vsel %vm2204, %v2205, %v2203
    %v2207 = vrsqrt.pop %v1096
    %v2208 = vmul.f32 %v2207, %v1096
    %v2209 = vmul.f32 %v2208, %v2207
    %v2210 = vmul.f32 0.5, %v2209
    %v2211 = vsub.f32 1.5, %v2210
    %v2212 = vmul.f32 %v2207, %v2211
    %v2213 = vmul.f32 %v1096, %v2212
    %vm2214 = vcmp.eq.f32.partialorder %v1096, inf
    %v2215 = vsel %vm2214, %v1096, %v2213
    %vm2216 = vcmp.eq.f32.partialorder %v1096, 0.0
    %v2217 = vand.u32 %v1096, 2147483648
    %v2218 = vsel %vm2216, %v2217, %v2215
    %v2219 = vrsqrt.pop %v1099
    %v2220 = vmul.f32 %v2219, %v1099
    %v2221 = vmul.f32 %v2220, %v2219
    %v2222 = vmul.f32 0.5, %v2221
    %v2223 = vsub.f32 1.5, %v2222
    %v2224 = vmul.f32 %v2219, %v2223
    %v2225 = vmul.f32 %v1099, %v2224
    %vm2226 = vcmp.eq.f32.partialorder %v1099, inf
    %v2227 = vsel %vm2226, %v1099, %v2225
    %vm2228 = vcmp.eq.f32.partialorder %v1099, 0.0
    %v2229 = vand.u32 %v1099, 2147483648
    %v2230 = vsel %vm2228, %v2229, %v2227
    %v2231 = vrsqrt.pop %v1102
    %v2232 = vmul.f32 %v2231, %v1102
    %v2233 = vmul.f32 %v2232, %v2231
    %v2234 = vmul.f32 0.5, %v2233
    %v2235 = vsub.f32 1.5, %v2234
    %v2236 = vmul.f32 %v2231, %v2235
    %v2237 = vmul.f32 %v1102, %v2236
    %vm2238 = vcmp.eq.f32.partialorder %v1102, inf
    %v2239 = vsel %vm2238, %v1102, %v2237
    %vm2240 = vcmp.eq.f32.partialorder %v1102, 0.0
    %v2241 = vand.u32 %v1102, 2147483648
    %v2242 = vsel %vm2240, %v2241, %v2239
    %v2243 = vrsqrt.pop %v1105
    %v2244 = vmul.f32 %v2243, %v1105
    %v2245 = vmul.f32 %v2244, %v2243
    %v2246 = vmul.f32 0.5, %v2245
    %v2247 = vsub.f32 1.5, %v2246
    %v2248 = vmul.f32 %v2243, %v2247
    %v2249 = vmul.f32 %v1105, %v2248
    %vm2250 = vcmp.eq.f32.partialorder %v1105, inf
    %v2251 = vsel %vm2250, %v1105, %v2249
    %vm2252 = vcmp.eq.f32.partialorder %v1105, 0.0
    %v2253 = vand.u32 %v1105, 2147483648
    %v2254 = vsel %vm2252, %v2253, %v2251
    %v2255 = vrsqrt.pop %v1108
    %v2256 = vmul.f32 %v2255, %v1108
    %v2257 = vmul.f32 %v2256, %v2255
    %v2258 = vmul.f32 0.5, %v2257
    %v2259 = vsub.f32 1.5, %v2258
    %v2260 = vmul.f32 %v2255, %v2259
    %v2261 = vmul.f32 %v1108, %v2260
    %vm2262 = vcmp.eq.f32.partialorder %v1108, inf
    %v2263 = vsel %vm2262, %v1108, %v2261
    %vm2264 = vcmp.eq.f32.partialorder %v1108, 0.0
    %v2265 = vand.u32 %v1108, 2147483648
    %v2266 = vsel %vm2264, %v2265, %v2263
    %v2267 = vrsqrt.pop %v1111
    %v2268 = vmul.f32 %v2267, %v1111
    %v2269 = vmul.f32 %v2268, %v2267
    %v2270 = vmul.f32 0.5, %v2269
    %v2271 = vsub.f32 1.5, %v2270
    %v2272 = vmul.f32 %v2267, %v2271
    %v2273 = vmul.f32 %v1111, %v2272
    %vm2274 = vcmp.eq.f32.partialorder %v1111, inf
    %v2275 = vsel %vm2274, %v1111, %v2273
    %vm2276 = vcmp.eq.f32.partialorder %v1111, 0.0
    %v2277 = vand.u32 %v1111, 2147483648
    %v2278 = vsel %vm2276, %v2277, %v2275
    %v2279 = vrsqrt.pop %v1114
    %v2280 = vmul.f32 %v2279, %v1114
    %v2281 = vmul.f32 %v2280, %v2279
    %v2282 = vmul.f32 0.5, %v2281
    %v2283 = vsub.f32 1.5, %v2282
    %v2284 = vmul.f32 %v2279, %v2283
    %v2285 = vmul.f32 %v1114, %v2284
    %vm2286 = vcmp.eq.f32.partialorder %v1114, inf
    %v2287 = vsel %vm2286, %v1114, %v2285
    %vm2288 = vcmp.eq.f32.partialorder %v1114, 0.0
    %v2289 = vand.u32 %v1114, 2147483648
    %v2290 = vsel %vm2288, %v2289, %v2287
    %v2291 = vrsqrt.pop %v1117
    %v2292 = vmul.f32 %v2291, %v1117
    %v2293 = vmul.f32 %v2292, %v2291
    %v2294 = vmul.f32 0.5, %v2293
    %v2295 = vsub.f32 1.5, %v2294
    %v2296 = vmul.f32 %v2291, %v2295
    %v2297 = vmul.f32 %v1117, %v2296
    %vm2298 = vcmp.eq.f32.partialorder %v1117, inf
    %v2299 = vsel %vm2298, %v1117, %v2297
    %vm2300 = vcmp.eq.f32.partialorder %v1117, 0.0
    %v2301 = vand.u32 %v1117, 2147483648
    %v2302 = vsel %vm2300, %v2301, %v2299
    %v2303 = vrsqrt.pop %v1120
    %v2304 = vmul.f32 %v2303, %v1120
    %v2305 = vmul.f32 %v2304, %v2303
    %v2306 = vmul.f32 0.5, %v2305
    %v2307 = vsub.f32 1.5, %v2306
    %v2308 = vmul.f32 %v2303, %v2307
    %v2309 = vmul.f32 %v1120, %v2308
    %vm2310 = vcmp.eq.f32.partialorder %v1120, inf
    %v2311 = vsel %vm2310, %v1120, %v2309
    %vm2312 = vcmp.eq.f32.partialorder %v1120, 0.0
    %v2313 = vand.u32 %v1120, 2147483648
    %v2314 = vsel %vm2312, %v2313, %v2311
    %v2315 = vrsqrt.pop %v1123
    %v2316 = vmul.f32 %v2315, %v1123
    %v2317 = vmul.f32 %v2316, %v2315
    %v2318 = vmul.f32 0.5, %v2317
    %v2319 = vsub.f32 1.5, %v2318
    %v2320 = vmul.f32 %v2315, %v2319
    %v2321 = vmul.f32 %v1123, %v2320
    %vm2322 = vcmp.eq.f32.partialorder %v1123, inf
    %v2323 = vsel %vm2322, %v1123, %v2321
    %vm2324 = vcmp.eq.f32.partialorder %v1123, 0.0
    %v2325 = vand.u32 %v1123, 2147483648
    %v2326 = vsel %vm2324, %v2325, %v2323
    %v2327 = vrsqrt.pop %v1126
    %v2328 = vmul.f32 %v2327, %v1126
    %v2329 = vmul.f32 %v2328, %v2327
    %v2330 = vmul.f32 0.5, %v2329
    %v2331 = vsub.f32 1.5, %v2330
    %v2332 = vmul.f32 %v2327, %v2331
    %v2333 = vmul.f32 %v1126, %v2332
    %vm2334 = vcmp.eq.f32.partialorder %v1126, inf
    %v2335 = vsel %vm2334, %v1126, %v2333
    %vm2336 = vcmp.eq.f32.partialorder %v1126, 0.0
    %v2337 = vand.u32 %v1126, 2147483648
    %v2338 = vsel %vm2336, %v2337, %v2335
    %v2339 = vrsqrt.pop %v1129
    %v2340 = vmul.f32 %v2339, %v1129
    %v2341 = vmul.f32 %v2340, %v2339
    %v2342 = vmul.f32 0.5, %v2341
    %v2343 = vsub.f32 1.5, %v2342
    %v2344 = vmul.f32 %v2339, %v2343
    %v2345 = vmul.f32 %v1129, %v2344
    %vm2346 = vcmp.eq.f32.partialorder %v1129, inf
    %v2347 = vsel %vm2346, %v1129, %v2345
    %vm2348 = vcmp.eq.f32.partialorder %v1129, 0.0
    %v2349 = vand.u32 %v1129, 2147483648
    %v2350 = vsel %vm2348, %v2349, %v2347
    %v2351 = vrsqrt.pop %v1132
    %v2352 = vmul.f32 %v2351, %v1132
    %v2353 = vmul.f32 %v2352, %v2351
    %v2354 = vmul.f32 0.5, %v2353
    %v2355 = vsub.f32 1.5, %v2354
    %v2356 = vmul.f32 %v2351, %v2355
    %v2357 = vmul.f32 %v1132, %v2356
    %vm2358 = vcmp.eq.f32.partialorder %v1132, inf
    %v2359 = vsel %vm2358, %v1132, %v2357
    %vm2360 = vcmp.eq.f32.partialorder %v1132, 0.0
    %v2361 = vand.u32 %v1132, 2147483648
    %v2362 = vsel %vm2360, %v2361, %v2359
    %v2363 = vrsqrt.pop %v1135
    %v2364 = vmul.f32 %v2363, %v1135
    %v2365 = vmul.f32 %v2364, %v2363
    %v2366 = vmul.f32 0.5, %v2365
    %v2367 = vsub.f32 1.5, %v2366
    %v2368 = vmul.f32 %v2363, %v2367
    %v2369 = vmul.f32 %v1135, %v2368
    %vm2370 = vcmp.eq.f32.partialorder %v1135, inf
    %v2371 = vsel %vm2370, %v1135, %v2369
    %vm2372 = vcmp.eq.f32.partialorder %v1135, 0.0
    %v2373 = vand.u32 %v1135, 2147483648
    %v2374 = vsel %vm2372, %v2373, %v2371
    %v2375 = vrsqrt.pop %v1138
    %v2376 = vmul.f32 %v2375, %v1138
    %v2377 = vmul.f32 %v2376, %v2375
    %v2378 = vmul.f32 0.5, %v2377
    %v2379 = vsub.f32 1.5, %v2378
    %v2380 = vmul.f32 %v2375, %v2379
    %v2381 = vmul.f32 %v1138, %v2380
    %vm2382 = vcmp.eq.f32.partialorder %v1138, inf
    %v2383 = vsel %vm2382, %v1138, %v2381
    %vm2384 = vcmp.eq.f32.partialorder %v1138, 0.0
    %v2385 = vand.u32 %v1138, 2147483648
    %v2386 = vsel %vm2384, %v2385, %v2383
    %v2387 = vrsqrt.pop %v1141
    %v2388 = vmul.f32 %v2387, %v1141
    %v2389 = vmul.f32 %v2388, %v2387
    %v2390 = vmul.f32 0.5, %v2389
    %v2391 = vsub.f32 1.5, %v2390
    %v2392 = vmul.f32 %v2387, %v2391
    %v2393 = vmul.f32 %v1141, %v2392
    %vm2394 = vcmp.eq.f32.partialorder %v1141, inf
    %v2395 = vsel %vm2394, %v1141, %v2393
    %vm2396 = vcmp.eq.f32.partialorder %v1141, 0.0
    %v2397 = vand.u32 %v1141, 2147483648
    %v2398 = vsel %vm2396, %v2397, %v2395
    %v2399 = vrsqrt.pop %v1144
    %v2400 = vmul.f32 %v2399, %v1144
    %v2401 = vmul.f32 %v2400, %v2399
    %v2402 = vmul.f32 0.5, %v2401
    %v2403 = vsub.f32 1.5, %v2402
    %v2404 = vmul.f32 %v2399, %v2403
    %v2405 = vmul.f32 %v1144, %v2404
    %vm2406 = vcmp.eq.f32.partialorder %v1144, inf
    %v2407 = vsel %vm2406, %v1144, %v2405
    %vm2408 = vcmp.eq.f32.partialorder %v1144, 0.0
    %v2409 = vand.u32 %v1144, 2147483648
    %v2410 = vsel %vm2408, %v2409, %v2407
    %v2411 = vrsqrt.pop %v1147
    %v2412 = vmul.f32 %v2411, %v1147
    %v2413 = vmul.f32 %v2412, %v2411
    %v2414 = vmul.f32 0.5, %v2413
    %v2415 = vsub.f32 1.5, %v2414
    %v2416 = vmul.f32 %v2411, %v2415
    %v2417 = vmul.f32 %v1147, %v2416
    %vm2418 = vcmp.eq.f32.partialorder %v1147, inf
    %v2419 = vsel %vm2418, %v1147, %v2417
    %vm2420 = vcmp.eq.f32.partialorder %v1147, 0.0
    %v2421 = vand.u32 %v1147, 2147483648
    %v2422 = vsel %vm2420, %v2421, %v2419
    %v2423 = vrsqrt.pop %v1150
    %v2424 = vmul.f32 %v2423, %v1150
    %v2425 = vmul.f32 %v2424, %v2423
    %v2426 = vmul.f32 0.5, %v2425
    %v2427 = vsub.f32 1.5, %v2426
    %v2428 = vmul.f32 %v2423, %v2427
    %v2429 = vmul.f32 %v1150, %v2428
    %vm2430 = vcmp.eq.f32.partialorder %v1150, inf
    %v2431 = vsel %vm2430, %v1150, %v2429
    %vm2432 = vcmp.eq.f32.partialorder %v1150, 0.0
    %v2433 = vand.u32 %v1150, 2147483648
    %v2434 = vsel %vm2432, %v2433, %v2431
    %v2435 = vrsqrt.pop %v1153
    %v2436 = vmul.f32 %v2435, %v1153
    %v2437 = vmul.f32 %v2436, %v2435
    %v2438 = vmul.f32 0.5, %v2437
    %v2439 = vsub.f32 1.5, %v2438
    %v2440 = vmul.f32 %v2435, %v2439
    %v2441 = vmul.f32 %v1153, %v2440
    %vm2442 = vcmp.eq.f32.partialorder %v1153, inf
    %v2443 = vsel %vm2442, %v1153, %v2441
    %vm2444 = vcmp.eq.f32.partialorder %v1153, 0.0
    %v2445 = vand.u32 %v1153, 2147483648
    %v2446 = vsel %vm2444, %v2445, %v2443
    %v2447 = vrsqrt.pop %v1156
    %v2448 = vmul.f32 %v2447, %v1156
    %v2449 = vmul.f32 %v2448, %v2447
    %v2450 = vmul.f32 0.5, %v2449
    %v2451 = vsub.f32 1.5, %v2450
    %v2452 = vmul.f32 %v2447, %v2451
    %v2453 = vmul.f32 %v1156, %v2452
    %vm2454 = vcmp.eq.f32.partialorder %v1156, inf
    %v2455 = vsel %vm2454, %v1156, %v2453
    %vm2456 = vcmp.eq.f32.partialorder %v1156, 0.0
    %v2457 = vand.u32 %v1156, 2147483648
    %v2458 = vsel %vm2456, %v2457, %v2455
    %v2459 = vrsqrt.pop %v1159
    %v2460 = vmul.f32 %v2459, %v1159
    %v2461 = vmul.f32 %v2460, %v2459
    %v2462 = vmul.f32 0.5, %v2461
    %v2463 = vsub.f32 1.5, %v2462
    %v2464 = vmul.f32 %v2459, %v2463
    %v2465 = vmul.f32 %v1159, %v2464
    %vm2466 = vcmp.eq.f32.partialorder %v1159, inf
    %v2467 = vsel %vm2466, %v1159, %v2465
    %vm2468 = vcmp.eq.f32.partialorder %v1159, 0.0
    %v2469 = vand.u32 %v1159, 2147483648
    %v2470 = vsel %vm2468, %v2469, %v2467
    %v2471 = vrsqrt.pop %v1162
    %v2472 = vmul.f32 %v2471, %v1162
    %v2473 = vmul.f32 %v2472, %v2471
    %v2474 = vmul.f32 0.5, %v2473
    %v2475 = vsub.f32 1.5, %v2474
    %v2476 = vmul.f32 %v2471, %v2475
    %v2477 = vmul.f32 %v1162, %v2476
    %vm2478 = vcmp.eq.f32.partialorder %v1162, inf
    %v2479 = vsel %vm2478, %v1162, %v2477
    %vm2480 = vcmp.eq.f32.partialorder %v1162, 0.0
    %v2481 = vand.u32 %v1162, 2147483648
    %v2482 = vsel %vm2480, %v2481, %v2479
    %v2483 = vrsqrt.pop %v1165
    %v2484 = vmul.f32 %v2483, %v1165
    %v2485 = vmul.f32 %v2484, %v2483
    %v2486 = vmul.f32 0.5, %v2485
    %v2487 = vsub.f32 1.5, %v2486
    %v2488 = vmul.f32 %v2483, %v2487
    %v2489 = vmul.f32 %v1165, %v2488
    %vm2490 = vcmp.eq.f32.partialorder %v1165, inf
    %v2491 = vsel %vm2490, %v1165, %v2489
    %vm2492 = vcmp.eq.f32.partialorder %v1165, 0.0
    %v2493 = vand.u32 %v1165, 2147483648
    %v2494 = vsel %vm2492, %v2493, %v2491
    %v2495 = vrsqrt.pop %v1168
    %v2496 = vmul.f32 %v2495, %v1168
    %v2497 = vmul.f32 %v2496, %v2495
    %v2498 = vmul.f32 0.5, %v2497
    %v2499 = vsub.f32 1.5, %v2498
    %v2500 = vmul.f32 %v2495, %v2499
    %v2501 = vmul.f32 %v1168, %v2500
    %vm2502 = vcmp.eq.f32.partialorder %v1168, inf
    %v2503 = vsel %vm2502, %v1168, %v2501
    %vm2504 = vcmp.eq.f32.partialorder %v1168, 0.0
    %v2505 = vand.u32 %v1168, 2147483648
    %v2506 = vsel %vm2504, %v2505, %v2503
    %v2507 = vrsqrt.pop %v1171
    %v2508 = vmul.f32 %v2507, %v1171
    %v2509 = vmul.f32 %v2508, %v2507
    %v2510 = vmul.f32 0.5, %v2509
    %v2511 = vsub.f32 1.5, %v2510
    %v2512 = vmul.f32 %v2507, %v2511
    %v2513 = vmul.f32 %v1171, %v2512
    %vm2514 = vcmp.eq.f32.partialorder %v1171, inf
    %v2515 = vsel %vm2514, %v1171, %v2513
    %vm2516 = vcmp.eq.f32.partialorder %v1171, 0.0
    %v2517 = vand.u32 %v1171, 2147483648
    %v2518 = vsel %vm2516, %v2517, %v2515
    %v2519 = vrsqrt.pop %v1174
    %v2520 = vmul.f32 %v2519, %v1174
    %v2521 = vmul.f32 %v2520, %v2519
    %v2522 = vmul.f32 0.5, %v2521
    %v2523 = vsub.f32 1.5, %v2522
    %v2524 = vmul.f32 %v2519, %v2523
    %v2525 = vmul.f32 %v1174, %v2524
    %vm2526 = vcmp.eq.f32.partialorder %v1174, inf
    %v2527 = vsel %vm2526, %v1174, %v2525
    %vm2528 = vcmp.eq.f32.partialorder %v1174, 0.0
    %v2529 = vand.u32 %v1174, 2147483648
    %v2530 = vsel %vm2528, %v2529, %v2527
    %v2531 = vrsqrt.pop %v1177
    %v2532 = vmul.f32 %v2531, %v1177
    %v2533 = vmul.f32 %v2532, %v2531
    %v2534 = vmul.f32 0.5, %v2533
    %v2535 = vsub.f32 1.5, %v2534
    %v2536 = vmul.f32 %v2531, %v2535
    %v2537 = vmul.f32 %v1177, %v2536
    %vm2538 = vcmp.eq.f32.partialorder %v1177, inf
    %v2539 = vsel %vm2538, %v1177, %v2537
    %vm2540 = vcmp.eq.f32.partialorder %v1177, 0.0
    %v2541 = vand.u32 %v1177, 2147483648
    %v2542 = vsel %vm2540, %v2541, %v2539
    %v2543 = vrsqrt.pop %v1180
    %v2544 = vmul.f32 %v2543, %v1180
    %v2545 = vmul.f32 %v2544, %v2543
    %v2546 = vmul.f32 0.5, %v2545
    %v2547 = vsub.f32 1.5, %v2546
    %v2548 = vmul.f32 %v2543, %v2547
    %v2549 = vmul.f32 %v1180, %v2548
    %vm2550 = vcmp.eq.f32.partialorder %v1180, inf
    %v2551 = vsel %vm2550, %v1180, %v2549
    %vm2552 = vcmp.eq.f32.partialorder %v1180, 0.0
    %v2553 = vand.u32 %v1180, 2147483648
    %v2554 = vsel %vm2552, %v2553, %v2551
    %v2555 = vrsqrt.pop %v1183
    %v2556 = vmul.f32 %v2555, %v1183
    %v2557 = vmul.f32 %v2556, %v2555
    %v2558 = vmul.f32 0.5, %v2557
    %v2559 = vsub.f32 1.5, %v2558
    %v2560 = vmul.f32 %v2555, %v2559
    %v2561 = vmul.f32 %v1183, %v2560
    %vm2562 = vcmp.eq.f32.partialorder %v1183, inf
    %v2563 = vsel %vm2562, %v1183, %v2561
    %vm2564 = vcmp.eq.f32.partialorder %v1183, 0.0
    %v2565 = vand.u32 %v1183, 2147483648
    %v2566 = vsel %vm2564, %v2565, %v2563
    %v2567 = vrsqrt.pop %v1186
    %v2568 = vmul.f32 %v2567, %v1186
    %v2569 = vmul.f32 %v2568, %v2567
    %v2570 = vmul.f32 0.5, %v2569
    %v2571 = vsub.f32 1.5, %v2570
    %v2572 = vmul.f32 %v2567, %v2571
    %v2573 = vmul.f32 %v1186, %v2572
    %vm2574 = vcmp.eq.f32.partialorder %v1186, inf
    %v2575 = vsel %vm2574, %v1186, %v2573
    %vm2576 = vcmp.eq.f32.partialorder %v1186, 0.0
    %v2577 = vand.u32 %v1186, 2147483648
    %v2578 = vsel %vm2576, %v2577, %v2575
    %v2579 = vrsqrt.pop %v1189
    %v2580 = vmul.f32 %v2579, %v1189
    %v2581 = vmul.f32 %v2580, %v2579
    %v2582 = vmul.f32 0.5, %v2581
    %v2583 = vsub.f32 1.5, %v2582
    %v2584 = vmul.f32 %v2579, %v2583
    %v2585 = vmul.f32 %v1189, %v2584
    %vm2586 = vcmp.eq.f32.partialorder %v1189, inf
    %v2587 = vsel %vm2586, %v1189, %v2585
    %vm2588 = vcmp.eq.f32.partialorder %v1189, 0.0
    %v2589 = vand.u32 %v1189, 2147483648
    %v2590 = vsel %vm2588, %v2589, %v2587
    %v2591 = vrsqrt.pop %v1192
    %v2592 = vmul.f32 %v2591, %v1192
    %v2593 = vmul.f32 %v2592, %v2591
    %v2594 = vmul.f32 0.5, %v2593
    %v2595 = vsub.f32 1.5, %v2594
    %v2596 = vmul.f32 %v2591, %v2595
    %v2597 = vmul.f32 %v1192, %v2596
    %vm2598 = vcmp.eq.f32.partialorder %v1192, inf
    %v2599 = vsel %vm2598, %v1192, %v2597
    %vm2600 = vcmp.eq.f32.partialorder %v1192, 0.0
    %v2601 = vand.u32 %v1192, 2147483648
    %v2602 = vsel %vm2600, %v2601, %v2599
    %v2603 = vrsqrt.pop %v1195
    %v2604 = vmul.f32 %v2603, %v1195
    %v2605 = vmul.f32 %v2604, %v2603
    %v2606 = vmul.f32 0.5, %v2605
    %v2607 = vsub.f32 1.5, %v2606
    %v2608 = vmul.f32 %v2603, %v2607
    %v2609 = vmul.f32 %v1195, %v2608
    %vm2610 = vcmp.eq.f32.partialorder %v1195, inf
    %v2611 = vsel %vm2610, %v1195, %v2609
    %vm2612 = vcmp.eq.f32.partialorder %v1195, 0.0
    %v2613 = vand.u32 %v1195, 2147483648
    %v2614 = vsel %vm2612, %v2613, %v2611
    %v2615 = vrsqrt.pop %v1198
    %v2616 = vmul.f32 %v2615, %v1198
    %v2617 = vmul.f32 %v2616, %v2615
    %v2618 = vmul.f32 0.5, %v2617
    %v2619 = vsub.f32 1.5, %v2618
    %v2620 = vmul.f32 %v2615, %v2619
    %v2621 = vmul.f32 %v1198, %v2620
    %vm2622 = vcmp.eq.f32.partialorder %v1198, inf
    %v2623 = vsel %vm2622, %v1198, %v2621
    %vm2624 = vcmp.eq.f32.partialorder %v1198, 0.0
    %v2625 = vand.u32 %v1198, 2147483648
    %v2626 = vsel %vm2624, %v2625, %v2623
    %v2627 = vrsqrt.pop %v1201
    %v2628 = vmul.f32 %v2627, %v1201
    %v2629 = vmul.f32 %v2628, %v2627
    %v2630 = vmul.f32 0.5, %v2629
    %v2631 = vsub.f32 1.5, %v2630
    %v2632 = vmul.f32 %v2627, %v2631
    %v2633 = vmul.f32 %v1201, %v2632
    %vm2634 = vcmp.eq.f32.partialorder %v1201, inf
    %v2635 = vsel %vm2634, %v1201, %v2633
    %vm2636 = vcmp.eq.f32.partialorder %v1201, 0.0
    %v2637 = vand.u32 %v1201, 2147483648
    %v2638 = vsel %vm2636, %v2637, %v2635
    %v2639 = vrsqrt.pop %v1204
    %v2640 = vmul.f32 %v2639, %v1204
    %v2641 = vmul.f32 %v2640, %v2639
    %v2642 = vmul.f32 0.5, %v2641
    %v2643 = vsub.f32 1.5, %v2642
    %v2644 = vmul.f32 %v2639, %v2643
    %v2645 = vmul.f32 %v1204, %v2644
    %vm2646 = vcmp.eq.f32.partialorder %v1204, inf
    %v2647 = vsel %vm2646, %v1204, %v2645
    %vm2648 = vcmp.eq.f32.partialorder %v1204, 0.0
    %v2649 = vand.u32 %v1204, 2147483648
    %v2650 = vsel %vm2648, %v2649, %v2647
    %v2651 = vrsqrt.pop %v1207
    %v2652 = vmul.f32 %v2651, %v1207
    %v2653 = vmul.f32 %v2652, %v2651
    %v2654 = vmul.f32 0.5, %v2653
    %v2655 = vsub.f32 1.5, %v2654
    %v2656 = vmul.f32 %v2651, %v2655
    %v2657 = vmul.f32 %v1207, %v2656
    %vm2658 = vcmp.eq.f32.partialorder %v1207, inf
    %v2659 = vsel %vm2658, %v1207, %v2657
    %vm2660 = vcmp.eq.f32.partialorder %v1207, 0.0
    %v2661 = vand.u32 %v1207, 2147483648
    %v2662 = vsel %vm2660, %v2661, %v2659
    %v2663 = vrsqrt.pop %v1210
    %v2664 = vmul.f32 %v2663, %v1210
    %v2665 = vmul.f32 %v2664, %v2663
    %v2666 = vmul.f32 0.5, %v2665
    %v2667 = vsub.f32 1.5, %v2666
    %v2668 = vmul.f32 %v2663, %v2667
    %v2669 = vmul.f32 %v1210, %v2668
    %vm2670 = vcmp.eq.f32.partialorder %v1210, inf
    %v2671 = vsel %vm2670, %v1210, %v2669
    %vm2672 = vcmp.eq.f32.partialorder %v1210, 0.0
    %v2673 = vand.u32 %v1210, 2147483648
    %v2674 = vsel %vm2672, %v2673, %v2671
    %v2675 = vrsqrt.pop %v1213
    %v2676 = vmul.f32 %v2675, %v1213
    %v2677 = vmul.f32 %v2676, %v2675
    %v2678 = vmul.f32 0.5, %v2677
    %v2679 = vsub.f32 1.5, %v2678
    %v2680 = vmul.f32 %v2675, %v2679
    %v2681 = vmul.f32 %v1213, %v2680
    %vm2682 = vcmp.eq.f32.partialorder %v1213, inf
    %v2683 = vsel %vm2682, %v1213, %v2681
    %vm2684 = vcmp.eq.f32.partialorder %v1213, 0.0
    %v2685 = vand.u32 %v1213, 2147483648
    %v2686 = vsel %vm2684, %v2685, %v2683
    %v2687 = vrsqrt.pop %v1216
    %v2688 = vmul.f32 %v2687, %v1216
    %v2689 = vmul.f32 %v2688, %v2687
    %v2690 = vmul.f32 0.5, %v2689
    %v2691 = vsub.f32 1.5, %v2690
    %v2692 = vmul.f32 %v2687, %v2691
    %v2693 = vmul.f32 %v1216, %v2692
    %vm2694 = vcmp.eq.f32.partialorder %v1216, inf
    %v2695 = vsel %vm2694, %v1216, %v2693
    %vm2696 = vcmp.eq.f32.partialorder %v1216, 0.0
    %v2697 = vand.u32 %v1216, 2147483648
    %v2698 = vsel %vm2696, %v2697, %v2695
    %v2699 = vrsqrt.pop %v1219
    %v2700 = vmul.f32 %v2699, %v1219
    %v2701 = vmul.f32 %v2700, %v2699
    %v2702 = vmul.f32 0.5, %v2701
    %v2703 = vsub.f32 1.5, %v2702
    %v2704 = vmul.f32 %v2699, %v2703
    %v2705 = vmul.f32 %v1219, %v2704
    %vm2706 = vcmp.eq.f32.partialorder %v1219, inf
    %v2707 = vsel %vm2706, %v1219, %v2705
    %vm2708 = vcmp.eq.f32.partialorder %v1219, 0.0
    %v2709 = vand.u32 %v1219, 2147483648
    %v2710 = vsel %vm2708, %v2709, %v2707
    %v2711 = vrsqrt.pop %v1222
    %v2712 = vmul.f32 %v2711, %v1222
    %v2713 = vmul.f32 %v2712, %v2711
    %v2714 = vmul.f32 0.5, %v2713
    %v2715 = vsub.f32 1.5, %v2714
    %v2716 = vmul.f32 %v2711, %v2715
    %v2717 = vmul.f32 %v1222, %v2716
    %vm2718 = vcmp.eq.f32.partialorder %v1222, inf
    %v2719 = vsel %vm2718, %v1222, %v2717
    %vm2720 = vcmp.eq.f32.partialorder %v1222, 0.0
    %v2721 = vand.u32 %v1222, 2147483648
    %v2722 = vsel %vm2720, %v2721, %v2719
    %v2723 = vrsqrt.pop %v1225
    %v2724 = vmul.f32 %v2723, %v1225
    %v2725 = vmul.f32 %v2724, %v2723
    %v2726 = vmul.f32 0.5, %v2725
    %v2727 = vsub.f32 1.5, %v2726
    %v2728 = vmul.f32 %v2723, %v2727
    %v2729 = vmul.f32 %v1225, %v2728
    %vm2730 = vcmp.eq.f32.partialorder %v1225, inf
    %v2731 = vsel %vm2730, %v1225, %v2729
    %vm2732 = vcmp.eq.f32.partialorder %v1225, 0.0
    %v2733 = vand.u32 %v1225, 2147483648
    %v2734 = vsel %vm2732, %v2733, %v2731
    %v2735 = vrsqrt.pop %v1228
    %v2736 = vmul.f32 %v2735, %v1228
    %v2737 = vmul.f32 %v2736, %v2735
    %v2738 = vmul.f32 0.5, %v2737
    %v2739 = vsub.f32 1.5, %v2738
    %v2740 = vmul.f32 %v2735, %v2739
    %v2741 = vmul.f32 %v1228, %v2740
    %vm2742 = vcmp.eq.f32.partialorder %v1228, inf
    %v2743 = vsel %vm2742, %v1228, %v2741
    %vm2744 = vcmp.eq.f32.partialorder %v1228, 0.0
    %v2745 = vand.u32 %v1228, 2147483648
    %v2746 = vsel %vm2744, %v2745, %v2743
    %v2747 = vrsqrt.pop %v1231
    %v2748 = vmul.f32 %v2747, %v1231
    %v2749 = vmul.f32 %v2748, %v2747
    %v2750 = vmul.f32 0.5, %v2749
    %v2751 = vsub.f32 1.5, %v2750
    %v2752 = vmul.f32 %v2747, %v2751
    %v2753 = vmul.f32 %v1231, %v2752
    %vm2754 = vcmp.eq.f32.partialorder %v1231, inf
    %v2755 = vsel %vm2754, %v1231, %v2753
    %vm2756 = vcmp.eq.f32.partialorder %v1231, 0.0
    %v2757 = vand.u32 %v1231, 2147483648
    %v2758 = vsel %vm2756, %v2757, %v2755
    %v2759 = vrsqrt.pop %v1234
    %v2760 = vmul.f32 %v2759, %v1234
    %v2761 = vmul.f32 %v2760, %v2759
    %v2762 = vmul.f32 0.5, %v2761
    %v2763 = vsub.f32 1.5, %v2762
    %v2764 = vmul.f32 %v2759, %v2763
    %v2765 = vmul.f32 %v1234, %v2764
    %vm2766 = vcmp.eq.f32.partialorder %v1234, inf
    %v2767 = vsel %vm2766, %v1234, %v2765
    %vm2768 = vcmp.eq.f32.partialorder %v1234, 0.0
    %v2769 = vand.u32 %v1234, 2147483648
    %v2770 = vsel %vm2768, %v2769, %v2767
    %v2899 = vlaneseq
    %v2900 = vand.u32 %v2899, 127
    %v2901 = vperm.slane %v1246, %v2900
    %v2902 = vperm.slane %v1258, %v2900
    %v2903 = vperm.slane %v1270, %v2900
    %v2904 = vperm.slane %v1282, %v2900
    %v2905 = vperm.slane %v1294, %v2900
    %v2906 = vperm.slane %v1306, %v2900
    %v2907 = vperm.slane %v1318, %v2900
    %v2908 = vperm.slane %v1330, %v2900
    %v2909 = vperm.slane %v1342, %v2900
    %v2910 = vperm.slane %v1354, %v2900
    %v2911 = vperm.slane %v1366, %v2900
    %v2912 = vperm.slane %v1378, %v2900
    %v2913 = vperm.slane %v1390, %v2900
    %v2914 = vperm.slane %v1402, %v2900
    %v2915 = vperm.slane %v1414, %v2900
    %v2916 = vperm.slane %v1426, %v2900
    %v2917 = vperm.slane %v1438, %v2900
    %v2918 = vperm.slane %v1450, %v2900
    %v2919 = vperm.slane %v1462, %v2900
    %v2920 = vperm.slane %v1474, %v2900
    %v2921 = vperm.slane %v1486, %v2900
    %v2922 = vperm.slane %v1498, %v2900
    %v2923 = vperm.slane %v1510, %v2900
    %v2924 = vperm.slane %v1522, %v2900
    %v2925 = vperm.slane %v1534, %v2900
    %v2926 = vperm.slane %v1546, %v2900
    %v2927 = vperm.slane %v1558, %v2900
    %v2928 = vperm.slane %v1570, %v2900
    %v2929 = vperm.slane %v1582, %v2900
    %v2930 = vperm.slane %v1594, %v2900
    %v2931 = vperm.slane %v1606, %v2900
    %v2932 = vperm.slane %v1618, %v2900
    %v2933 = vperm.slane %v1630, %v2900
    %v2934 = vperm.slane %v1642, %v2900
    %v2935 = vperm.slane %v1654, %v2900
    %v2936 = vperm.slane %v1666, %v2900
    %v2937 = vperm.slane %v1678, %v2900
    %v2938 = vperm.slane %v1690, %v2900
    %v2939 = vperm.slane %v1702, %v2900
    %v2940 = vperm.slane %v1714, %v2900
    %v2941 = vperm.slane %v1726, %v2900
    %v2942 = vperm.slane %v1738, %v2900
    %v2943 = vperm.slane %v1750, %v2900
    %v2944 = vperm.slane %v1762, %v2900
    %v2945 = vperm.slane %v1774, %v2900
    %v2946 = vperm.slane %v1786, %v2900
    %v2947 = vperm.slane %v1798, %v2900
    %v2948 = vperm.slane %v1810, %v2900
    %v2949 = vperm.slane %v1822, %v2900
    %v2950 = vperm.slane %v1834, %v2900
    %v2951 = vperm.slane %v1846, %v2900
    %v2952 = vperm.slane %v1858, %v2900
    %v2953 = vperm.slane %v1870, %v2900
    %v2954 = vperm.slane %v1882, %v2900
    %v2955 = vperm.slane %v1894, %v2900
    %v2956 = vperm.slane %v1906, %v2900
    %v2957 = vperm.slane %v1918, %v2900
    %v2958 = vperm.slane %v1930, %v2900
    %v2959 = vperm.slane %v1942, %v2900
    %v2960 = vperm.slane %v1954, %v2900
    %v2961 = vperm.slane %v1966, %v2900
    %v2962 = vperm.slane %v1978, %v2900
    %v2963 = vperm.slane %v1990, %v2900
    %v2964 = vperm.slane %v2002, %v2900
    %v2965 = vperm.slane %v2014, %v2900
    %v2966 = vperm.slane %v2026, %v2900
    %v2967 = vperm.slane %v2038, %v2900
    %v2968 = vperm.slane %v2050, %v2900
    %v2969 = vperm.slane %v2062, %v2900
    %v2970 = vperm.slane %v2074, %v2900
    %v2971 = vperm.slane %v2086, %v2900
    %v2972 = vperm.slane %v2098, %v2900
    %v2973 = vperm.slane %v2110, %v2900
    %v2974 = vperm.slane %v2122, %v2900
    %v2975 = vperm.slane %v2134, %v2900
    %v2976 = vperm.slane %v2146, %v2900
    %v2977 = vperm.slane %v2158, %v2900
    %v2978 = vperm.slane %v2170, %v2900
    %v2979 = vperm.slane %v2182, %v2900
    %v2980 = vperm.slane %v2194, %v2900
    %v2981 = vperm.slane %v2206, %v2900
    %v2982 = vperm.slane %v2218, %v2900
    %v2983 = vperm.slane %v2230, %v2900
    %v2984 = vperm.slane %v2242, %v2900
    %v2985 = vperm.slane %v2254, %v2900
    %v2986 = vperm.slane %v2266, %v2900
    %v2987 = vperm.slane %v2278, %v2900
    %v2988 = vperm.slane %v2290, %v2900
    %v2989 = vperm.slane %v2302, %v2900
    %v2990 = vperm.slane %v2314, %v2900
    %v2991 = vperm.slane %v2326, %v2900
    %v2992 = vperm.slane %v2338, %v2900
    %v2993 = vperm.slane %v2350, %v2900
    %v2994 = vperm.slane %v2362, %v2900
    %v2995 = vperm.slane %v2374, %v2900
    %v2996 = vperm.slane %v2386, %v2900
    %v2997 = vperm.slane %v2398, %v2900
    %v2998 = vperm.slane %v2410, %v2900
    %v2999 = vperm.slane %v2422, %v2900
    %v3000 = vperm.slane %v2434, %v2900
    %v3001 = vperm.slane %v2446, %v2900
    %v3002 = vperm.slane %v2458, %v2900
    %v3003 = vperm.slane %v2470, %v2900
    %v3004 = vperm.slane %v2482, %v2900
    %v3005 = vperm.slane %v2494, %v2900
    %v3006 = vperm.slane %v2506, %v2900
    %v3007 = vperm.slane %v2518, %v2900
    %v3008 = vperm.slane %v2530, %v2900
    %v3009 = vperm.slane %v2542, %v2900
    %v3010 = vperm.slane %v2554, %v2900
    %v3011 = vperm.slane %v2566, %v2900
    %v3012 = vperm.slane %v2578, %v2900
    %v3013 = vperm.slane %v2590, %v2900
    %v3014 = vperm.slane %v2602, %v2900
    %v3015 = vperm.slane %v2614, %v2900
    %v3016 = vperm.slane %v2626, %v2900
    %v3017 = vperm.slane %v2638, %v2900
    %v3018 = vperm.slane %v2650, %v2900
    %v3019 = vperm.slane %v2662, %v2900
    %v3020 = vperm.slane %v2674, %v2900
    %v3021 = vperm.slane %v2686, %v2900
    %v3022 = vperm.slane %v2698, %v2900
    %v3023 = vperm.slane %v2710, %v2900
    %v3024 = vperm.slane %v2722, %v2900
    %v3025 = vperm.slane %v2734, %v2900
    %v3026 = vperm.slane %v2746, %v2900
    %v3027 = vperm.slane %v2758, %v2900
    %v3028 = vperm.slane %v2770, %v2900
    %vm3029 = vcmask 1041409
    %v3030 = vsel %vm3029, %v2902, %v2901
    %vm3031 = vcmask 1042434
    %v3032 = vsel %vm3031, %v2903, %v3030
    %vm3033 = vcmask 1043459
    %v3034 = vsel %vm3033, %v2904, %v3032
    %vm3035 = vcmask 1044484
    %v3036 = vsel %vm3035, %v2905, %v3034
    %vm3037 = vcmask 1045509
    %v3038 = vsel %vm3037, %v2906, %v3036
    %vm3039 = vcmask 1046534
    %v3040 = vsel %vm3039, %v2907, %v3038
    %vm3041 = vcmask 1047559
    %v3042 = vsel %vm3041, %v2908, %v3040
    %v3043 = vsel %vm3029, %v2910, %v2909
    %v3044 = vsel %vm3031, %v2911, %v3043
    %v3045 = vsel %vm3033, %v2912, %v3044
    %v3046 = vsel %vm3035, %v2913, %v3045
    %v3047 = vsel %vm3037, %v2914, %v3046
    %v3048 = vsel %vm3039, %v2915, %v3047
    %v3049 = vsel %vm3041, %v2916, %v3048
    %v3050 = vsel %vm3029, %v2918, %v2917
    %v3051 = vsel %vm3031, %v2919, %v3050
    %v3052 = vsel %vm3033, %v2920, %v3051
    %v3053 = vsel %vm3035, %v2921, %v3052
    %v3054 = vsel %vm3037, %v2922, %v3053
    %v3055 = vsel %vm3039, %v2923, %v3054
    %v3056 = vsel %vm3041, %v2924, %v3055
    %v3057 = vsel %vm3029, %v2926, %v2925
    %v3058 = vsel %vm3031, %v2927, %v3057
    %v3059 = vsel %vm3033, %v2928, %v3058
    %v3060 = vsel %vm3035, %v2929, %v3059
    %v3061 = vsel %vm3037, %v2930, %v3060
    %v3062 = vsel %vm3039, %v2931, %v3061
    %v3063 = vsel %vm3041, %v2932, %v3062
    %v3064 = vsel %vm3029, %v2934, %v2933
    %v3065 = vsel %vm3031, %v2935, %v3064
    %v3066 = vsel %vm3033, %v2936, %v3065
    %v3067 = vsel %vm3035, %v2937, %v3066
    %v3068 = vsel %vm3037, %v2938, %v3067
    %v3069 = vsel %vm3039, %v2939, %v3068
    %v3070 = vsel %vm3041, %v2940, %v3069
    %v3071 = vsel %vm3029, %v2942, %v2941
    %v3072 = vsel %vm3031, %v2943, %v3071
    %v3073 = vsel %vm3033, %v2944, %v3072
    %v3074 = vsel %vm3035, %v2945, %v3073
    %v3075 = vsel %vm3037, %v2946, %v3074
    %v3076 = vsel %vm3039, %v2947, %v3075
    %v3077 = vsel %vm3041, %v2948, %v3076
    %v3078 = vsel %vm3029, %v2950, %v2949
    %v3079 = vsel %vm3031, %v2951, %v3078
    %v3080 = vsel %vm3033, %v2952, %v3079
    %v3081 = vsel %vm3035, %v2953, %v3080
    %v3082 = vsel %vm3037, %v2954, %v3081
    %v3083 = vsel %vm3039, %v2955, %v3082
    %v3084 = vsel %vm3041, %v2956, %v3083
    %v3085 = vsel %vm3029, %v2958, %v2957
    %v3086 = vsel %vm3031, %v2959, %v3085
    %v3087 = vsel %vm3033, %v2960, %v3086
    %v3088 = vsel %vm3035, %v2961, %v3087
    %v3089 = vsel %vm3037, %v2962, %v3088
    %v3090 = vsel %vm3039, %v2963, %v3089
    %v3091 = vsel %vm3041, %v2964, %v3090
    %v3092 = vsel %vm3029, %v2966, %v2965
    %v3093 = vsel %vm3031, %v2967, %v3092
    %v3094 = vsel %vm3033, %v2968, %v3093
    %v3095 = vsel %vm3035, %v2969, %v3094
    %v3096 = vsel %vm3037, %v2970, %v3095
    %v3097 = vsel %vm3039, %v2971, %v3096
    %v3098 = vsel %vm3041, %v2972, %v3097
    %v3099 = vsel %vm3029, %v2974, %v2973
    %v3100 = vsel %vm3031, %v2975, %v3099
    %v3101 = vsel %vm3033, %v2976, %v3100
    %v3102 = vsel %vm3035, %v2977, %v3101
    %v3103 = vsel %vm3037, %v2978, %v3102
    %v3104 = vsel %vm3039, %v2979, %v3103
    %v3105 = vsel %vm3041, %v2980, %v3104
    %v3106 = vsel %vm3029, %v2982, %v2981
    %v3107 = vsel %vm3031, %v2983, %v3106
    %v3108 = vsel %vm3033, %v2984, %v3107
    %v3109 = vsel %vm3035, %v2985, %v3108
    %v3110 = vsel %vm3037, %v2986, %v3109
    %v3111 = vsel %vm3039, %v2987, %v3110
    %v3112 = vsel %vm3041, %v2988, %v3111
    %v3113 = vsel %vm3029, %v2990, %v2989
    %v3114 = vsel %vm3031, %v2991, %v3113
    %v3115 = vsel %vm3033, %v2992, %v3114
    %v3116 = vsel %vm3035, %v2993, %v3115
    %v3117 = vsel %vm3037, %v2994, %v3116
    %v3118 = vsel %vm3039, %v2995, %v3117
    %v3119 = vsel %vm3041, %v2996, %v3118
    %v3120 = vsel %vm3029, %v2998, %v2997
    %v3121 = vsel %vm3031, %v2999, %v3120
    %v3122 = vsel %vm3033, %v3000, %v3121
    %v3123 = vsel %vm3035, %v3001, %v3122
    %v3124 = vsel %vm3037, %v3002, %v3123
    %v3125 = vsel %vm3039, %v3003, %v3124
    %v3126 = vsel %vm3041, %v3004, %v3125
    %v3127 = vsel %vm3029, %v3006, %v3005
    %v3128 = vsel %vm3031, %v3007, %v3127
    %v3129 = vsel %vm3033, %v3008, %v3128
    %v3130 = vsel %vm3035, %v3009, %v3129
    %v3131 = vsel %vm3037, %v3010, %v3130
    %v3132 = vsel %vm3039, %v3011, %v3131
    %v3133 = vsel %vm3041, %v3012, %v3132
    %v3134 = vsel %vm3029, %v3014, %v3013
    %v3135 = vsel %vm3031, %v3015, %v3134
    %v3136 = vsel %vm3033, %v3016, %v3135
    %v3137 = vsel %vm3035, %v3017, %v3136
    %v3138 = vsel %vm3037, %v3018, %v3137
    %v3139 = vsel %vm3039, %v3019, %v3138
    %v3140 = vsel %vm3041, %v3020, %v3139
    %v3141 = vsel %vm3029, %v3022, %v3021
    %v3142 = vsel %vm3031, %v3023, %v3141
    %v3143 = vsel %vm3033, %v3024, %v3142
    %v3144 = vsel %vm3035, %v3025, %v3143
    %v3145 = vsel %vm3037, %v3026, %v3144
    %v3146 = vsel %vm3039, %v3027, %v3145
    %v3147 = vsel %vm3041, %v3028, %v3146
    %vm3164 = vcmask 64512
    %v3165 = vsel %vm3164, %v3042, 0.0
    %3166 = vadd.xlane.f32.xlu0 %v3165
    %v3167 = vpop.xlane.xlu0 %3166
    %v3168 = vsel %vm3164, %v3049, 0.0
    %3169 = vadd.xlane.f32.xlu0 %v3168
    %v3170 = vpop.xlane.xlu0 %3169
    %v3171 = vsel %vm3164, %v3056, 0.0
    %3172 = vadd.xlane.f32.xlu0 %v3171
    %v3173 = vpop.xlane.xlu0 %3172
    %v3174 = vsel %vm3164, %v3063, 0.0
    %3175 = vadd.xlane.f32.xlu0 %v3174
    %v3176 = vpop.xlane.xlu0 %3175
    %v3177 = vsel %vm3164, %v3070, 0.0
    %3178 = vadd.xlane.f32.xlu0 %v3177
    %v3179 = vpop.xlane.xlu0 %3178
    %v3180 = vsel %vm3164, %v3077, 0.0
    %3181 = vadd.xlane.f32.xlu0 %v3180
    %v3182 = vpop.xlane.xlu0 %3181
    %v3183 = vsel %vm3164, %v3084, 0.0
    %3184 = vadd.xlane.f32.xlu0 %v3183
    %v3185 = vpop.xlane.xlu0 %3184
    %v3186 = vsel %vm3164, %v3091, 0.0
    %3187 = vadd.xlane.f32.xlu0 %v3186
    %v3188 = vpop.xlane.xlu0 %3187
    %v3189 = vsel %vm3164, %v3098, 0.0
    %3190 = vadd.xlane.f32.xlu0 %v3189
    %v3191 = vpop.xlane.xlu0 %3190
    %v3192 = vsel %vm3164, %v3105, 0.0
    %3193 = vadd.xlane.f32.xlu0 %v3192
    %v3194 = vpop.xlane.xlu0 %3193
    %v3195 = vsel %vm3164, %v3112, 0.0
    %3196 = vadd.xlane.f32.xlu0 %v3195
    %v3197 = vpop.xlane.xlu0 %3196
    %v3198 = vsel %vm3164, %v3119, 0.0
    %3199 = vadd.xlane.f32.xlu0 %v3198
    %v3200 = vpop.xlane.xlu0 %3199
    %v3201 = vsel %vm3164, %v3126, 0.0
    %3202 = vadd.xlane.f32.xlu0 %v3201
    %v3203 = vpop.xlane.xlu0 %3202
    %v3204 = vsel %vm3164, %v3133, 0.0
    %3205 = vadd.xlane.f32.xlu0 %v3204
    %v3206 = vpop.xlane.xlu0 %3205
    %v3207 = vsel %vm3164, %v3140, 0.0
    %3208 = vadd.xlane.f32.xlu0 %v3207
    %v3209 = vpop.xlane.xlu0 %3208
    %v3210 = vsel %vm3164, %v3147, 0.0
    %3211 = vadd.xlane.f32.xlu0 %v3210
    %v3212 = vpop.xlane.xlu0 %3211
    %v3213 = vsel %vm119, %v3167, 0.0
    %v3214 = vsel %vm119, %v3170, 0.0
    %v3215 = vadd.f32 %v3213, %v3214
    %v3216 = vsel %vm119, %v3173, 0.0
    %v3217 = vadd.f32 %v3215, %v3216
    %v3218 = vsel %vm119, %v3176, 0.0
    %v3219 = vadd.f32 %v3217, %v3218
    %v3220 = vsel %vm119, %v3179, 0.0
    %v3221 = vadd.f32 %v3219, %v3220
    %v3222 = vsel %vm119, %v3182, 0.0
    %v3223 = vadd.f32 %v3221, %v3222
    %v3224 = vsel %vm119, %v3185, 0.0
    %v3225 = vadd.f32 %v3223, %v3224
    %v3226 = vsel %vm119, %v3188, 0.0
    %v3227 = vadd.f32 %v3225, %v3226
    %v3228 = vsel %vm119, %v3191, 0.0
    %v3229 = vadd.f32 %v3227, %v3228
    %v3230 = vsel %vm119, %v3194, 0.0
    %v3231 = vadd.f32 %v3229, %v3230
    %v3232 = vsel %vm119, %v3197, 0.0
    %v3233 = vadd.f32 %v3231, %v3232
    %v3234 = vsel %vm119, %v3200, 0.0
    %v3235 = vadd.f32 %v3233, %v3234
    %v3236 = vsel %vm119, %v3203, 0.0
    %v3237 = vadd.f32 %v3235, %v3236
    %v3238 = vsel %vm119, %v3206, 0.0
    %v3239 = vadd.f32 %v3237, %v3238
    %v3240 = vsel %vm119, %v3209, 0.0
    %v3241 = vadd.f32 %v3239, %v3240
    %v3242 = vsel %vm119, %v3212, 0.0
    %v3243 = vadd.f32 %v3241, %v3242
    %3244 = vadd.xlane.f32.xlu0 %v3243
    %v3245 = vpop.xlane.xlu0 %3244
    %v3246 = vrot.slane %v3245, 4
    %v3247 = vadd.f32 %v3245, %v3246
    %v3248 = vrot.slane %v3247, 2
    %v3249 = vadd.f32 %v3247, %v3248
    %v3250 = vrot.slane %v3249, 1
    %v3251 = vadd.f32 %v3249, %v3250
    %s3252 = vtos %v3251
    %s3253 = smul.f32 %s131, 0.0625
    %s3254 = smul.f32 %s193, 0.1
    %s3255 = smul.f32 %s3254, 0.004166667
    %s3256 = sadd.f32 %s3253, %s3255
    %s3257 = smul.f32 %s154, 0.01
    %s3258 = smul.f32 %s3257, 0.00390625
    %s3259 = sadd.f32 %s3256, %s3258
    %s3260 = smul.f32 %s3252, 0.1
    %s3261 = smul.f32 %s3260, 0.0009765625
    %s3262 = sadd.f32 %s3259, %s3261
    %v3263 = vstv %s3262
    %vm3264 = vcmask 0
    %3265 = vst.msk [vmem:[#allocation5] sm:$0x1] %vm3264, %v3263
    // Predicated region
    $region18: #{tpu_custom_call.1} parent=1 // pred_check
      _
    $region19: #{tpu_custom_call.1} parent=1 // pred_check_branch
      %3267 = sbr.rel (0) target = $region21
    $region20: #{tpu_custom_call.1} parent=1 // pred_region
      %3269 = vsyncadd [#allocation4], 0
      %s3271 = sshll.u32 [#allocation5], 4
      %s3272 = int_to_ptr.vmem [resolvable:$true] %s3271
      %s3273 = sshll.u32 %s3, 4
      %s3274 = int_to_ptr.hbm [resolvable:$true] %s3273
      %3276 = dma.vmem_to_hbm [thread:$0]  %s3272, 16, %s3274, [#allocation4]
    $region21: #{tpu_custom_call.1} parent=1 // pred_fallthru
      _
    // Predicated region
    $region22: #{tpu_custom_call.1} parent=1 // pred_check
      _
    $region23: #{tpu_custom_call.1} parent=1 // pred_check_branch
      %3278 = sbr.rel (0) target = $region25
    $region24: #{tpu_custom_call.1} parent=1 // pred_region
      %3280 = dma.done [#allocation4], 16
    $region25: #{tpu_custom_call.1} parent=1 // pred_fallthru
      _
    %3281 = vsyncpa [#allocation3], 1
    %3282 = vsyncpa [#allocation4], 1

</llo_original>
